<compile_context>
chip_gen: v6e
topology: v6e:2x2x1
jax: 0.10.0
libtpu: 0.0.40
codegen_flags: <defaults>
</compile_context>

<pallas_src>
import functools

import jax
import jax.numpy as jnp
import numpy as np
from jax.experimental import pallas as pl
from jax.experimental.pallas import tpu as pltpu


# ----------------------------------------------------------------------------
# Config
# ----------------------------------------------------------------------------

CONFIG = [
    ("conv2d", [8, 4, 3, 3, 1, 1]),   # (ch_out, ch_in, kh, kw, stride, padding)
    ("bn", [8]),
    ("relu", [True]),
    ("max_pool2d", [2, 2, 0]),
    ("conv2d", [8, 8, 3, 3, 1, 1]),
    ("bn", [8]),
    ("relu", [True]),
    ("max_pool2d", [2, 2, 0]),
    ("flatten", []),
    ("linear", [5, 8 * 4 * 4]),       # (out_features, in_features)
]

BN_EPS = 1e-5
SUBLANE = 8     # f32 sublane tile
LANE = 128      # lane tile


def _round_up(v, m):
    return -(-v // m) * m


# ----------------------------------------------------------------------------
# Host-side constants (shape-only numpy -> jit constants)
# ----------------------------------------------------------------------------

def _conv_taps(H, W, kh, kw, N):
    """Per-tap lane-roll amounts + 0/1 validity masks for a 'same' conv
    (stride 1, pad (k-1)/2) on the (C, N*H*W) lane-stacked layout."""
    HW = H * W
    L = N * HW
    ph, pw = (kh - 1) // 2, (kw - 1) // 2
    hh = np.arange(HW) // W
    ww = np.arange(HW) % W
    shifts, use_mask, masks = [], [], []
    for i in range(kh):
        for j in range(kw):
            d = (i - ph) * W + (j - pw)       # source = dest + d (flat, in-sample)
            shifts.append(int((-d) % L))      # roll(x, s)[l] == x[(l + d) % L]
            valid = ((hh + i - ph >= 0) & (hh + i - ph < H) &
                     (ww + j - pw >= 0) & (ww + j - pw < W))
            use_mask.append(not bool(valid.all()))
            masks.append(np.tile(valid.astype(np.float32), N))
    masks = np.stack(masks).reshape(kh * kw, 1, L)
    return shifts, use_mask, masks


def _pool_consts(H, W, k, stride, N):
    """Roll amounts for the window max + a single stride-gather 0/1 selector
    for max_pool on the (C, N*H*W) layout.  Output lanes padded to 128."""
    HW = H * W
    L = N * HW
    Ho = (H - k) // stride + 1
    Wo = (W - k) // stride + 1
    Lo = N * Ho * Wo
    Lo_pad = _round_up(Lo, LANE)
    shifts = []
    for a in range(k):
        for b in range(k):
            d = a * W + b
            if d:
                shifts.append(int((-d) % L))
    sel = np.zeros((L, Lo_pad), np.float32)
    for n in range(N):
        for ho in range(Ho):
            for wo in range(Wo):
                src = n * HW + (ho * stride) * W + (wo * stride)
                dst = n * Ho * Wo + ho * Wo + wo
                sel[src, dst] = 1.0
    return shifts, sel, Ho, Wo, Lo, Lo_pad


# ----------------------------------------------------------------------------
# Build the fused kernel inputs + static execution plan from the config
# ----------------------------------------------------------------------------

def _build_fused_graph(config, vars_, x):
    N, C, H, W = x.shape
    L = N * H * W
    if L % LANE:
        # TODO(synk): lane-pad the input image for N*H*W not a multiple of 128.
        raise NotImplementedError("N*H*W must be a multiple of 128")
    C_pad = _round_up(C, SUBLANE)

    # Lane-stacked, channel-padded input activation: (C_pad, N*H*W).
    xs = jnp.transpose(x.reshape(N, C, H * W), (1, 0, 2)).reshape(C, L)
    xs = jnp.pad(xs, ((0, C_pad - C), (0, 0)))

    inputs = [xs]
    plan = []
    idx = 0
    flattened = False
    valid_lanes = L
    meta = None

    def push(arr):
        inputs.append(arr)
        return len(inputs) - 1

    for name, param in config:
        if name == "conv2d":
            co, ci, kh, kw, stride, pad = param
            assert ci == C, (ci, C)
            if stride != 1 or kh != kw or 2 * pad != kh - 1:
                # TODO(synk): strided / 'valid' convs need a different gather.
                raise NotImplementedError("only 'same' stride-1 conv supported")
            if valid_lanes != L or L != N * H * W:
                raise NotImplementedError("conv after lane-padded pool output")
            w, b = vars_[idx], vars_[idx + 1]
            idx += 2
            co_pad = _round_up(co, SUBLANE)
            shifts, use_mask, masks = _conv_taps(H, W, kh, kw, N)
            # (co, ci, kh, kw) -> (co_pad, kh*kw*C_pad): one K=taps*C contraction.
            wt = jnp.transpose(w, (2, 3, 1, 0))                 # (kh, kw, ci, co)
            wt = jnp.pad(wt, ((0, 0), (0, 0),
                              (0, C_pad - ci), (0, co_pad - co)))
            wflat = wt.reshape(kh * kw * C_pad, co_pad).T       # (co_pad, K)
            bias = jnp.pad(b, (0, co_pad - co)).reshape(co_pad, 1)
            plan.append(("conv", push(jnp.asarray(masks)), push(wflat),
                         push(bias), tuple(shifts), tuple(use_mask)))
            C, C_pad = co, co_pad
        elif name == "bn":
            g, bb = vars_[idx], vars_[idx + 1]
            idx += 2
            if valid_lanes != L:
                raise NotImplementedError("bn after lane-padded pool output")
            gp = jnp.pad(g, (0, C_pad - C), constant_values=1.0).reshape(C_pad, 1)
            bp = jnp.pad(bb, (0, C_pad - C)).reshape(C_pad, 1)
            plan.append(("bn", push(gp), push(bp), float(N * H * W)))
        elif name == "relu":
            plan.append(("relu",))
        elif name == "max_pool2d":
            k, stride, pad = param
            if pad != 0:
                # TODO(synk): padded max_pool2d (pads with -inf) not implemented.
                raise NotImplementedError("max_pool2d with padding != 0")
            shifts, sel, Ho, Wo, Lo, Lo_pad = _pool_consts(H, W, k, stride, N)
            # 0/1 selector stored as bf16 (exact; halves VMEM + vld bandwidth).
            plan.append(("pool", push(jnp.asarray(sel, dtype=jnp.bfloat16)),
                         tuple(shifts)))
            H, W, L, valid_lanes = Ho, Wo, Lo_pad, Lo
        elif name == "flatten":
            flattened = True
        elif name == "linear":
            if not flattened:
                # TODO(synk): linear on un-flattened activations unused here.
                raise NotImplementedError("linear before flatten")
            wl, bl = vars_[idx], vars_[idx + 1]
            idx += 2
            out_f, in_f = wl.shape
            HW = H * W
            assert in_f == C * HW, (in_f, C, H, W)
            out_pad = _round_up(out_f, SUBLANE)
            # (out, C*HW) -> (out_pad, HW*C_pad) matching row order of the
            # sublane-concatenated roll stack (p-major, channel-minor).
            wl3 = jnp.transpose(wl.reshape(out_f, C, HW), (0, 2, 1))  # (o, p, c)
            wl3 = jnp.pad(wl3, ((0, out_pad - out_f), (0, 0), (0, C_pad - C)))
            wflat = wl3.reshape(out_pad, HW * C_pad)
            bias = jnp.pad(bl, (0, out_pad - out_f)).reshape(out_pad, 1)
            shifts = tuple(int((-p) % L) for p in range(HW))
            plan.append(("linear", push(wflat), push(bias), shifts))
            meta = (out_pad, L, HW, out_f)
        else:
            # TODO(synk): convt2d / upsample / avg_pool2d / tanh / sigmoid /
            # leakyrelu / reshape branches unused by this config are not built.
            raise NotImplementedError(name)

    assert idx == len(vars_)
    if meta is None:
        raise NotImplementedError("config must end with a linear layer")
    return inputs, plan, meta


# ----------------------------------------------------------------------------
# The single fused Pallas kernel
# ----------------------------------------------------------------------------

def _make_fused_kernel(plan):
    def kernel(*refs):
        out_ref = refs[-1]
        x = refs[0][...]                      # (C_pad, N*H*W) f32, lane-stacked

        for stage in plan:
            kind = stage[0]

            if kind == "conv":
                # roll (XLU) + edge mask (VPU) per tap, sublane-concat, then one
                # K = taps*C_pad MXU contraction fused with the bias add.
                _, m_i, w_i, b_i, shifts, use_mask = stage
                blocks = []
                for t, s in enumerate(shifts):
                    r = x if s == 0 else pltpu.roll(x, s, axis=1)
                    if use_mask[t]:
                        r = r * refs[m_i][t]
                    blocks.append(r)
                tap_stack = jnp.concatenate(blocks, axis=0)
                x = (jnp.dot(refs[w_i][...], tap_stack,
                             preferred_element_type=jnp.float32)
                     + refs[b_i][...])

            elif kind == "bn":
                # Training-mode batch stats over the batch-stacked lanes,
                # single pass: var = E[x^2] - mean^2 (biased, count = N*H*W).
                _, g_i, b_i, count = stage
                inv = 1.0 / count
                s1 = jnp.sum(x, axis=1, keepdims=True)
                s2 = jnp.sum(x * x, axis=1, keepdims=True)
                mean = s1 * inv
                var = s2 * inv - mean * mean
                scale = jax.lax.rsqrt(var + BN_EPS) * refs[g_i][...]
                x = (x - mean) * scale + refs[b_i][...]

            elif kind == "relu":
                x = jnp.maximum(x, 0.0)

            elif kind == "pool":
                # Window max via rolls (XLU) + maxes (VPU), one stride gather.
                _, sel_i, shifts = stage
                m = x
                for s in shifts:
                    m = jnp.maximum(m, pltpu.roll(x, s, axis=1))
                sel = refs[sel_i][...]
                x = jnp.dot(m.astype(sel.dtype), sel,
                            preferred_element_type=jnp.float32)

            elif kind == "linear":
                # flatten + F.linear as a 'valid' HxW conv: HW rolls, one matmul.
                # Valid logits land at lanes n*H*W (transposed); padding lanes
                # hold junk and are sliced off outside the kernel.
                _, w_i, b_i, shifts = stage
                blocks = [x if s == 0 else pltpu.roll(x, s, axis=1)
                          for s in shifts]
                feats = jnp.concatenate(blocks, axis=0)
                x = (jnp.dot(refs[w_i][...], feats,
                             preferred_element_type=jnp.float32)
                     + refs[b_i][...])

        out_ref[...] = x                      # one dense (out_pad, 128) store

    return kernel


def learner_forward(x, vars_, config):
    batch = x.shape[0]
    inputs, plan, (out_pad, l_out, pick, out_f) = _build_fused_graph(
        config, vars_, x)
    kernel = _make_fused_kernel(plan)
    res = pl.pallas_call(
        kernel,
        out_shape=jax.ShapeDtypeStruct((out_pad, l_out), jnp.float32),
        in_specs=[pl.BlockSpec(memory_space=pltpu.MemorySpace.VMEM)
                  for _ in inputs],
        out_specs=pl.BlockSpec(memory_space=pltpu.MemorySpace.VMEM),
    )(*inputs)
    # TODO(synk): for v7x megacore, add a parallel grid axis over independent
    # MAML tasks (BN only couples samples within a task).
    # Logits are at lanes n*pick (transposed); slice + transpose outside.
    return res[:out_f, 0:batch * pick:pick].T


# ----------------------------------------------------------------------------
# Parameters (deterministic, PyTorch-style shapes / init)
# ----------------------------------------------------------------------------

def kaiming_normal(key, shape, fan_in):
    # torch.nn.init.kaiming_normal_ default: gain = sqrt(2), std = gain/sqrt(fan_in)
    std = (2.0 / fan_in) ** 0.5
    return std * jax.random.normal(key, shape, dtype=jnp.float32)


def build_params(config, key):
    vars_, vars_bn = [], []
    for name, param in config:
        if name == "conv2d":
            key, sub = jax.random.split(key)
            co, ci, kh, kw = param[:4]
            vars_.append(kaiming_normal(sub, (co, ci, kh, kw), ci * kh * kw))
            vars_.append(jnp.zeros((co,), jnp.float32))
        elif name == "linear":
            key, sub = jax.random.split(key)
            out_f, in_f = param
            vars_.append(kaiming_normal(sub, (out_f, in_f), in_f))
            vars_.append(jnp.zeros((out_f,), jnp.float32))
        elif name == "bn":
            vars_.append(jnp.ones((param[0],), jnp.float32))
            vars_.append(jnp.zeros((param[0],), jnp.float32))
            # TODO(synk): running_mean/var in-place updates (vars_bn) are not
            # performed; forward output in training mode is unaffected.
            vars_bn.append(jnp.zeros((param[0],), jnp.float32))
            vars_bn.append(jnp.ones((param[0],), jnp.float32))
        # activation / pooling / flatten layers have no parameters
    return vars_, vars_bn


if __name__ == "__main__":
    key = jax.random.PRNGKey(0)
    key, xkey = jax.random.split(key)
    x = jax.random.normal(xkey, (2, 4, 16, 16), dtype=jnp.float32)  # NCHW
    vars_, vars_bn = build_params(CONFIG, key)

    fwd = jax.jit(functools.partial(learner_forward, config=CONFIG))
    out = jax.block_until_ready(fwd(x, vars_))
    assert out.shape == (2, 5), out.shape
    print("KERNEL_OK")
</pallas_src>

<mosaic_0001>
module attributes {stable_mosaic.version = 11 : i64} {
  func.func @kernel(%arg0: memref<8x512xf32, #tpu.memory_space<vmem>>, %arg1: memref<9x1x512xf32, #tpu.memory_space<vmem>>, %arg2: memref<8x72xf32, #tpu.memory_space<vmem>>, %arg3: memref<8x1xf32, #tpu.memory_space<vmem>>, %arg4: memref<8x1xf32, #tpu.memory_space<vmem>>, %arg5: memref<8x1xf32, #tpu.memory_space<vmem>>, %arg6: memref<512x128xbf16, #tpu.memory_space<vmem>>, %arg7: memref<9x1x128xf32, #tpu.memory_space<vmem>>, %arg8: memref<8x72xf32, #tpu.memory_space<vmem>>, %arg9: memref<8x1xf32, #tpu.memory_space<vmem>>, %arg10: memref<8x1xf32, #tpu.memory_space<vmem>>, %arg11: memref<8x1xf32, #tpu.memory_space<vmem>>, %arg12: memref<128x128xbf16, #tpu.memory_space<vmem>>, %arg13: memref<8x128xf32, #tpu.memory_space<vmem>>, %arg14: memref<8x1xf32, #tpu.memory_space<vmem>>, %arg15: memref<8x128xf32, #tpu.memory_space<vmem>>) attributes {dimension_semantics = [], scalar_prefetch = 0 : i64, scratch_operands = 0 : i64, tpu.core_type = #tpu.core_type<tc>} {
    %c0 = arith.constant 0 : index
    %c0_0 = arith.constant 0 : index
    %0 = vector.load %arg0[%c0, %c0_0] : memref<8x512xf32, #tpu.memory_space<vmem>>, vector<8x512xf32>
    %c17_i32 = arith.constant 17 : i32
    %1 = tpu.dynamic_rotate %0 by %c17_i32 dim 1 : vector<8x512xf32>, i32 -> vector<8x512xf32>
    %c0_1 = arith.constant 0 : index
    %c0_2 = arith.constant 0 : index
    %c0_3 = arith.constant 0 : index
    %2 = vector.load %arg1[%c0_1, %c0_2, %c0_3] : memref<9x1x512xf32, #tpu.memory_space<vmem>>, vector<1x1x512xf32>
    %3 = vector.shape_cast %2 : vector<1x1x512xf32> to vector<1x512xf32>
    %4 = vector.broadcast %3 : vector<1x512xf32> to vector<8x512xf32>
    %5 = arith.mulf %1, %4 : vector<8x512xf32>
    %c16_i32 = arith.constant 16 : i32
    %6 = tpu.dynamic_rotate %0 by %c16_i32 dim 1 : vector<8x512xf32>, i32 -> vector<8x512xf32>
    %c1 = arith.constant 1 : index
    %c0_4 = arith.constant 0 : index
    %c0_5 = arith.constant 0 : index
    %7 = vector.load %arg1[%c1, %c0_4, %c0_5] : memref<9x1x512xf32, #tpu.memory_space<vmem>>, vector<1x1x512xf32>
    %8 = vector.shape_cast %7 : vector<1x1x512xf32> to vector<1x512xf32>
    %9 = vector.broadcast %8 : vector<1x512xf32> to vector<8x512xf32>
    %10 = arith.mulf %6, %9 : vector<8x512xf32>
    %c15_i32 = arith.constant 15 : i32
    %11 = tpu.dynamic_rotate %0 by %c15_i32 dim 1 : vector<8x512xf32>, i32 -> vector<8x512xf32>
    %c2 = arith.constant 2 : index
    %c0_6 = arith.constant 0 : index
    %c0_7 = arith.constant 0 : index
    %12 = vector.load %arg1[%c2, %c0_6, %c0_7] : memref<9x1x512xf32, #tpu.memory_space<vmem>>, vector<1x1x512xf32>
    %13 = vector.shape_cast %12 : vector<1x1x512xf32> to vector<1x512xf32>
    %14 = vector.broadcast %13 : vector<1x512xf32> to vector<8x512xf32>
    %15 = arith.mulf %11, %14 : vector<8x512xf32>
    %c1_i32 = arith.constant 1 : i32
    %16 = tpu.dynamic_rotate %0 by %c1_i32 dim 1 : vector<8x512xf32>, i32 -> vector<8x512xf32>
    %c3 = arith.constant 3 : index
    %c0_8 = arith.constant 0 : index
    %c0_9 = arith.constant 0 : index
    %17 = vector.load %arg1[%c3, %c0_8, %c0_9] : memref<9x1x512xf32, #tpu.memory_space<vmem>>, vector<1x1x512xf32>
    %18 = vector.shape_cast %17 : vector<1x1x512xf32> to vector<1x512xf32>
    %19 = vector.broadcast %18 : vector<1x512xf32> to vector<8x512xf32>
    %20 = arith.mulf %16, %19 : vector<8x512xf32>
    %c511_i32 = arith.constant 511 : i32
    %21 = tpu.dynamic_rotate %0 by %c511_i32 dim 1 : vector<8x512xf32>, i32 -> vector<8x512xf32>
    %c5 = arith.constant 5 : index
    %c0_10 = arith.constant 0 : index
    %c0_11 = arith.constant 0 : index
    %22 = vector.load %arg1[%c5, %c0_10, %c0_11] : memref<9x1x512xf32, #tpu.memory_space<vmem>>, vector<1x1x512xf32>
    %23 = vector.shape_cast %22 : vector<1x1x512xf32> to vector<1x512xf32>
    %24 = vector.broadcast %23 : vector<1x512xf32> to vector<8x512xf32>
    %25 = arith.mulf %21, %24 : vector<8x512xf32>
    %c497_i32 = arith.constant 497 : i32
    %26 = tpu.dynamic_rotate %0 by %c497_i32 dim 1 : vector<8x512xf32>, i32 -> vector<8x512xf32>
    %c6 = arith.constant 6 : index
    %c0_12 = arith.constant 0 : index
    %c0_13 = arith.constant 0 : index
    %27 = vector.load %arg1[%c6, %c0_12, %c0_13] : memref<9x1x512xf32, #tpu.memory_space<vmem>>, vector<1x1x512xf32>
    %28 = vector.shape_cast %27 : vector<1x1x512xf32> to vector<1x512xf32>
    %29 = vector.broadcast %28 : vector<1x512xf32> to vector<8x512xf32>
    %30 = arith.mulf %26, %29 : vector<8x512xf32>
    %c496_i32 = arith.constant 496 : i32
    %31 = tpu.dynamic_rotate %0 by %c496_i32 dim 1 : vector<8x512xf32>, i32 -> vector<8x512xf32>
    %c7 = arith.constant 7 : index
    %c0_14 = arith.constant 0 : index
    %c0_15 = arith.constant 0 : index
    %32 = vector.load %arg1[%c7, %c0_14, %c0_15] : memref<9x1x512xf32, #tpu.memory_space<vmem>>, vector<1x1x512xf32>
    %33 = vector.shape_cast %32 : vector<1x1x512xf32> to vector<1x512xf32>
    %34 = vector.broadcast %33 : vector<1x512xf32> to vector<8x512xf32>
    %35 = arith.mulf %31, %34 : vector<8x512xf32>
    %c495_i32 = arith.constant 495 : i32
    %36 = tpu.dynamic_rotate %0 by %c495_i32 dim 1 : vector<8x512xf32>, i32 -> vector<8x512xf32>
    %c8 = arith.constant 8 : index
    %c0_16 = arith.constant 0 : index
    %c0_17 = arith.constant 0 : index
    %37 = vector.load %arg1[%c8, %c0_16, %c0_17] : memref<9x1x512xf32, #tpu.memory_space<vmem>>, vector<1x1x512xf32>
    %38 = vector.shape_cast %37 : vector<1x1x512xf32> to vector<1x512xf32>
    %39 = vector.broadcast %38 : vector<1x512xf32> to vector<8x512xf32>
    %40 = arith.mulf %36, %39 : vector<8x512xf32>
    %41 = tpu.concatenate %5, %10, %15, %20, %0, %25, %30, %35, %40 in 0 : vector<8x512xf32>, vector<8x512xf32>, vector<8x512xf32>, vector<8x512xf32>, vector<8x512xf32>, vector<8x512xf32>, vector<8x512xf32>, vector<8x512xf32>, vector<8x512xf32> -> vector<72x512xf32>
    %c0_18 = arith.constant 0 : index
    %c0_19 = arith.constant 0 : index
    %42 = vector.load %arg2[%c0_18, %c0_19] : memref<8x72xf32, #tpu.memory_space<vmem>>, vector<8x72xf32>
    %cst = arith.constant dense<0.000000e+00> : vector<8x512xf32>
    %43 = tpu.matmul %42, %41, %cst {dimension_numbers = #tpu.dot_dimension_numbers<[1], [0], [0], [1], [0, 0, 1, 1], [], []>} : vector<8x72xf32>, vector<72x512xf32>, vector<8x512xf32> -> vector<8x512xf32>
    %c0_20 = arith.constant 0 : index
    %c0_21 = arith.constant 0 : index
    %44 = vector.load %arg3[%c0_20, %c0_21] : memref<8x1xf32, #tpu.memory_space<vmem>>, vector<8x1xf32>
    %45 = vector.broadcast %44 : vector<8x1xf32> to vector<8x512xf32>
    %46 = arith.addf %43, %45 : vector<8x512xf32>
    %cst_22 = arith.constant dense<0.000000e+00> : vector<8xf32>
    %47 = vector.multi_reduction <add>, %46, %cst_22 [1] : vector<8x512xf32> to vector<8xf32>
    %48 = vector.shape_cast %47 : vector<8xf32> to vector<8x1xf32>
    %49 = arith.mulf %46, %46 : vector<8x512xf32>
    %cst_23 = arith.constant dense<0.000000e+00> : vector<8xf32>
    %50 = vector.multi_reduction <add>, %49, %cst_23 [1] : vector<8x512xf32> to vector<8xf32>
    %51 = vector.shape_cast %50 : vector<8xf32> to vector<8x1xf32>
    %cst_24 = arith.constant 0.001953125 : f32
    %52 = vector.broadcast %cst_24 : f32 to vector<8x1xf32>
    %53 = arith.mulf %48, %52 : vector<8x1xf32>
    %cst_25 = arith.constant 0.001953125 : f32
    %54 = vector.broadcast %cst_25 : f32 to vector<8x1xf32>
    %55 = arith.mulf %51, %54 : vector<8x1xf32>
    %56 = arith.mulf %53, %53 : vector<8x1xf32>
    %57 = arith.subf %55, %56 : vector<8x1xf32>
    %cst_26 = arith.constant 9.99999974E-6 : f32
    %58 = vector.broadcast %cst_26 : f32 to vector<8x1xf32>
    %59 = arith.addf %57, %58 : vector<8x1xf32>
    %60 = math.rsqrt %59 : vector<8x1xf32>
    %c0_27 = arith.constant 0 : index
    %c0_28 = arith.constant 0 : index
    %61 = vector.load %arg4[%c0_27, %c0_28] : memref<8x1xf32, #tpu.memory_space<vmem>>, vector<8x1xf32>
    %62 = arith.mulf %60, %61 : vector<8x1xf32>
    %63 = vector.broadcast %53 : vector<8x1xf32> to vector<8x512xf32>
    %64 = arith.subf %46, %63 : vector<8x512xf32>
    %65 = vector.broadcast %62 : vector<8x1xf32> to vector<8x512xf32>
    %66 = arith.mulf %64, %65 : vector<8x512xf32>
    %c0_29 = arith.constant 0 : index
    %c0_30 = arith.constant 0 : index
    %67 = vector.load %arg5[%c0_29, %c0_30] : memref<8x1xf32, #tpu.memory_space<vmem>>, vector<8x1xf32>
    %68 = vector.broadcast %67 : vector<8x1xf32> to vector<8x512xf32>
    %69 = arith.addf %66, %68 : vector<8x512xf32>
    %cst_31 = arith.constant 0.000000e+00 : f32
    %70 = vector.broadcast %cst_31 : f32 to vector<8x512xf32>
    %71 = arith.maximumf %69, %70 : vector<8x512xf32>
    %c511_i32_32 = arith.constant 511 : i32
    %72 = tpu.dynamic_rotate %71 by %c511_i32_32 dim 1 : vector<8x512xf32>, i32 -> vector<8x512xf32>
    %73 = arith.maximumf %71, %72 : vector<8x512xf32>
    %c496_i32_33 = arith.constant 496 : i32
    %74 = tpu.dynamic_rotate %71 by %c496_i32_33 dim 1 : vector<8x512xf32>, i32 -> vector<8x512xf32>
    %75 = arith.maximumf %73, %74 : vector<8x512xf32>
    %c495_i32_34 = arith.constant 495 : i32
    %76 = tpu.dynamic_rotate %71 by %c495_i32_34 dim 1 : vector<8x512xf32>, i32 -> vector<8x512xf32>
    %77 = arith.maximumf %75, %76 : vector<8x512xf32>
    %c0_35 = arith.constant 0 : index
    %c0_36 = arith.constant 0 : index
    %78 = vector.load %arg6[%c0_35, %c0_36] : memref<512x128xbf16, #tpu.memory_space<vmem>>, vector<512x128xbf16>
    %79 = arith.truncf %77 : vector<8x512xf32> to vector<8x512xbf16>
    %cst_37 = arith.constant dense<0.000000e+00> : vector<8x128xf32>
    %80 = tpu.matmul %79, %78, %cst_37 {dimension_numbers = #tpu.dot_dimension_numbers<[1], [0], [0], [1], [0, 0, 1, 1], [], []>} : vector<8x512xbf16>, vector<512x128xbf16>, vector<8x128xf32> -> vector<8x128xf32>
    %c9_i32 = arith.constant 9 : i32
    %81 = tpu.dynamic_rotate %80 by %c9_i32 dim 1 : vector<8x128xf32>, i32 -> vector<8x128xf32>
    %c0_38 = arith.constant 0 : index
    %c0_39 = arith.constant 0 : index
    %c0_40 = arith.constant 0 : index
    %82 = vector.load %arg7[%c0_38, %c0_39, %c0_40] : memref<9x1x128xf32, #tpu.memory_space<vmem>>, vector<1x1x128xf32>
    %83 = vector.shape_cast %82 : vector<1x1x128xf32> to vector<1x128xf32>
    %84 = vector.broadcast %83 : vector<1x128xf32> to vector<8x128xf32>
    %85 = arith.mulf %81, %84 : vector<8x128xf32>
    %c8_i32 = arith.constant 8 : i32
    %86 = tpu.dynamic_rotate %80 by %c8_i32 dim 1 : vector<8x128xf32>, i32 -> vector<8x128xf32>
    %c1_41 = arith.constant 1 : index
    %c0_42 = arith.constant 0 : index
    %c0_43 = arith.constant 0 : index
    %87 = vector.load %arg7[%c1_41, %c0_42, %c0_43] : memref<9x1x128xf32, #tpu.memory_space<vmem>>, vector<1x1x128xf32>
    %88 = vector.shape_cast %87 : vector<1x1x128xf32> to vector<1x128xf32>
    %89 = vector.broadcast %88 : vector<1x128xf32> to vector<8x128xf32>
    %90 = arith.mulf %86, %89 : vector<8x128xf32>
    %c7_i32 = arith.constant 7 : i32
    %91 = tpu.dynamic_rotate %80 by %c7_i32 dim 1 : vector<8x128xf32>, i32 -> vector<8x128xf32>
    %c2_44 = arith.constant 2 : index
    %c0_45 = arith.constant 0 : index
    %c0_46 = arith.constant 0 : index
    %92 = vector.load %arg7[%c2_44, %c0_45, %c0_46] : memref<9x1x128xf32, #tpu.memory_space<vmem>>, vector<1x1x128xf32>
    %93 = vector.shape_cast %92 : vector<1x1x128xf32> to vector<1x128xf32>
    %94 = vector.broadcast %93 : vector<1x128xf32> to vector<8x128xf32>
    %95 = arith.mulf %91, %94 : vector<8x128xf32>
    %c1_i32_47 = arith.constant 1 : i32
    %96 = tpu.dynamic_rotate %80 by %c1_i32_47 dim 1 : vector<8x128xf32>, i32 -> vector<8x128xf32>
    %c3_48 = arith.constant 3 : index
    %c0_49 = arith.constant 0 : index
    %c0_50 = arith.constant 0 : index
    %97 = vector.load %arg7[%c3_48, %c0_49, %c0_50] : memref<9x1x128xf32, #tpu.memory_space<vmem>>, vector<1x1x128xf32>
    %98 = vector.shape_cast %97 : vector<1x1x128xf32> to vector<1x128xf32>
    %99 = vector.broadcast %98 : vector<1x128xf32> to vector<8x128xf32>
    %100 = arith.mulf %96, %99 : vector<8x128xf32>
    %c127_i32 = arith.constant 127 : i32
    %101 = tpu.dynamic_rotate %80 by %c127_i32 dim 1 : vector<8x128xf32>, i32 -> vector<8x128xf32>
    %c5_51 = arith.constant 5 : index
    %c0_52 = arith.constant 0 : index
    %c0_53 = arith.constant 0 : index
    %102 = vector.load %arg7[%c5_51, %c0_52, %c0_53] : memref<9x1x128xf32, #tpu.memory_space<vmem>>, vector<1x1x128xf32>
    %103 = vector.shape_cast %102 : vector<1x1x128xf32> to vector<1x128xf32>
    %104 = vector.broadcast %103 : vector<1x128xf32> to vector<8x128xf32>
    %105 = arith.mulf %101, %104 : vector<8x128xf32>
    %c121_i32 = arith.constant 121 : i32
    %106 = tpu.dynamic_rotate %80 by %c121_i32 dim 1 : vector<8x128xf32>, i32 -> vector<8x128xf32>
    %c6_54 = arith.constant 6 : index
    %c0_55 = arith.constant 0 : index
    %c0_56 = arith.constant 0 : index
    %107 = vector.load %arg7[%c6_54, %c0_55, %c0_56] : memref<9x1x128xf32, #tpu.memory_space<vmem>>, vector<1x1x128xf32>
    %108 = vector.shape_cast %107 : vector<1x1x128xf32> to vector<1x128xf32>
    %109 = vector.broadcast %108 : vector<1x128xf32> to vector<8x128xf32>
    %110 = arith.mulf %106, %109 : vector<8x128xf32>
    %c120_i32 = arith.constant 120 : i32
    %111 = tpu.dynamic_rotate %80 by %c120_i32 dim 1 : vector<8x128xf32>, i32 -> vector<8x128xf32>
    %c7_57 = arith.constant 7 : index
    %c0_58 = arith.constant 0 : index
    %c0_59 = arith.constant 0 : index
    %112 = vector.load %arg7[%c7_57, %c0_58, %c0_59] : memref<9x1x128xf32, #tpu.memory_space<vmem>>, vector<1x1x128xf32>
    %113 = vector.shape_cast %112 : vector<1x1x128xf32> to vector<1x128xf32>
    %114 = vector.broadcast %113 : vector<1x128xf32> to vector<8x128xf32>
    %115 = arith.mulf %111, %114 : vector<8x128xf32>
    %c119_i32 = arith.constant 119 : i32
    %116 = tpu.dynamic_rotate %80 by %c119_i32 dim 1 : vector<8x128xf32>, i32 -> vector<8x128xf32>
    %c8_60 = arith.constant 8 : index
    %c0_61 = arith.constant 0 : index
    %c0_62 = arith.constant 0 : index
    %117 = vector.load %arg7[%c8_60, %c0_61, %c0_62] : memref<9x1x128xf32, #tpu.memory_space<vmem>>, vector<1x1x128xf32>
    %118 = vector.shape_cast %117 : vector<1x1x128xf32> to vector<1x128xf32>
    %119 = vector.broadcast %118 : vector<1x128xf32> to vector<8x128xf32>
    %120 = arith.mulf %116, %119 : vector<8x128xf32>
    %121 = tpu.concatenate %85, %90, %95, %100, %80, %105, %110, %115, %120 in 0 : vector<8x128xf32>, vector<8x128xf32>, vector<8x128xf32>, vector<8x128xf32>, vector<8x128xf32>, vector<8x128xf32>, vector<8x128xf32>, vector<8x128xf32>, vector<8x128xf32> -> vector<72x128xf32>
    %c0_63 = arith.constant 0 : index
    %c0_64 = arith.constant 0 : index
    %122 = vector.load %arg8[%c0_63, %c0_64] : memref<8x72xf32, #tpu.memory_space<vmem>>, vector<8x72xf32>
    %cst_65 = arith.constant dense<0.000000e+00> : vector<8x128xf32>
    %123 = tpu.matmul %122, %121, %cst_65 {dimension_numbers = #tpu.dot_dimension_numbers<[1], [0], [0], [1], [0, 0, 1, 1], [], []>} : vector<8x72xf32>, vector<72x128xf32>, vector<8x128xf32> -> vector<8x128xf32>
    %c0_66 = arith.constant 0 : index
    %c0_67 = arith.constant 0 : index
    %124 = vector.load %arg9[%c0_66, %c0_67] : memref<8x1xf32, #tpu.memory_space<vmem>>, vector<8x1xf32>
    %125 = vector.broadcast %124 : vector<8x1xf32> to vector<8x128xf32>
    %126 = arith.addf %123, %125 : vector<8x128xf32>
    %cst_68 = arith.constant dense<0.000000e+00> : vector<8xf32>
    %127 = vector.multi_reduction <add>, %126, %cst_68 [1] : vector<8x128xf32> to vector<8xf32>
    %128 = vector.shape_cast %127 : vector<8xf32> to vector<8x1xf32>
    %129 = arith.mulf %126, %126 : vector<8x128xf32>
    %cst_69 = arith.constant dense<0.000000e+00> : vector<8xf32>
    %130 = vector.multi_reduction <add>, %129, %cst_69 [1] : vector<8x128xf32> to vector<8xf32>
    %131 = vector.shape_cast %130 : vector<8xf32> to vector<8x1xf32>
    %cst_70 = arith.constant 7.812500e-03 : f32
    %132 = vector.broadcast %cst_70 : f32 to vector<8x1xf32>
    %133 = arith.mulf %128, %132 : vector<8x1xf32>
    %cst_71 = arith.constant 7.812500e-03 : f32
    %134 = vector.broadcast %cst_71 : f32 to vector<8x1xf32>
    %135 = arith.mulf %131, %134 : vector<8x1xf32>
    %136 = arith.mulf %133, %133 : vector<8x1xf32>
    %137 = arith.subf %135, %136 : vector<8x1xf32>
    %cst_72 = arith.constant 9.99999974E-6 : f32
    %138 = vector.broadcast %cst_72 : f32 to vector<8x1xf32>
    %139 = arith.addf %137, %138 : vector<8x1xf32>
    %140 = math.rsqrt %139 : vector<8x1xf32>
    %c0_73 = arith.constant 0 : index
    %c0_74 = arith.constant 0 : index
    %141 = vector.load %arg10[%c0_73, %c0_74] : memref<8x1xf32, #tpu.memory_space<vmem>>, vector<8x1xf32>
    %142 = arith.mulf %140, %141 : vector<8x1xf32>
    %143 = vector.broadcast %133 : vector<8x1xf32> to vector<8x128xf32>
    %144 = arith.subf %126, %143 : vector<8x128xf32>
    %145 = vector.broadcast %142 : vector<8x1xf32> to vector<8x128xf32>
    %146 = arith.mulf %144, %145 : vector<8x128xf32>
    %c0_75 = arith.constant 0 : index
    %c0_76 = arith.constant 0 : index
    %147 = vector.load %arg11[%c0_75, %c0_76] : memref<8x1xf32, #tpu.memory_space<vmem>>, vector<8x1xf32>
    %148 = vector.broadcast %147 : vector<8x1xf32> to vector<8x128xf32>
    %149 = arith.addf %146, %148 : vector<8x128xf32>
    %cst_77 = arith.constant 0.000000e+00 : f32
    %150 = vector.broadcast %cst_77 : f32 to vector<8x128xf32>
    %151 = arith.maximumf %149, %150 : vector<8x128xf32>
    %c127_i32_78 = arith.constant 127 : i32
    %152 = tpu.dynamic_rotate %151 by %c127_i32_78 dim 1 : vector<8x128xf32>, i32 -> vector<8x128xf32>
    %153 = arith.maximumf %151, %152 : vector<8x128xf32>
    %c120_i32_79 = arith.constant 120 : i32
    %154 = tpu.dynamic_rotate %151 by %c120_i32_79 dim 1 : vector<8x128xf32>, i32 -> vector<8x128xf32>
    %155 = arith.maximumf %153, %154 : vector<8x128xf32>
    %c119_i32_80 = arith.constant 119 : i32
    %156 = tpu.dynamic_rotate %151 by %c119_i32_80 dim 1 : vector<8x128xf32>, i32 -> vector<8x128xf32>
    %157 = arith.maximumf %155, %156 : vector<8x128xf32>
    %c0_81 = arith.constant 0 : index
    %c0_82 = arith.constant 0 : index
    %158 = vector.load %arg12[%c0_81, %c0_82] : memref<128x128xbf16, #tpu.memory_space<vmem>>, vector<128x128xbf16>
    %159 = arith.truncf %157 : vector<8x128xf32> to vector<8x128xbf16>
    %cst_83 = arith.constant dense<0.000000e+00> : vector<8x128xf32>
    %160 = tpu.matmul %159, %158, %cst_83 {dimension_numbers = #tpu.dot_dimension_numbers<[1], [0], [0], [1], [0, 0, 1, 1], [], []>} : vector<8x128xbf16>, vector<128x128xbf16>, vector<8x128xf32> -> vector<8x128xf32>
    %c127_i32_84 = arith.constant 127 : i32
    %161 = tpu.dynamic_rotate %160 by %c127_i32_84 dim 1 : vector<8x128xf32>, i32 -> vector<8x128xf32>
    %c126_i32 = arith.constant 126 : i32
    %162 = tpu.dynamic_rotate %160 by %c126_i32 dim 1 : vector<8x128xf32>, i32 -> vector<8x128xf32>
    %c125_i32 = arith.constant 125 : i32
    %163 = tpu.dynamic_rotate %160 by %c125_i32 dim 1 : vector<8x128xf32>, i32 -> vector<8x128xf32>
    %c124_i32 = arith.constant 124 : i32
    %164 = tpu.dynamic_rotate %160 by %c124_i32 dim 1 : vector<8x128xf32>, i32 -> vector<8x128xf32>
    %c123_i32 = arith.constant 123 : i32
    %165 = tpu.dynamic_rotate %160 by %c123_i32 dim 1 : vector<8x128xf32>, i32 -> vector<8x128xf32>
    %c122_i32 = arith.constant 122 : i32
    %166 = tpu.dynamic_rotate %160 by %c122_i32 dim 1 : vector<8x128xf32>, i32 -> vector<8x128xf32>
    %c121_i32_85 = arith.constant 121 : i32
    %167 = tpu.dynamic_rotate %160 by %c121_i32_85 dim 1 : vector<8x128xf32>, i32 -> vector<8x128xf32>
    %c120_i32_86 = arith.constant 120 : i32
    %168 = tpu.dynamic_rotate %160 by %c120_i32_86 dim 1 : vector<8x128xf32>, i32 -> vector<8x128xf32>
    %c119_i32_87 = arith.constant 119 : i32
    %169 = tpu.dynamic_rotate %160 by %c119_i32_87 dim 1 : vector<8x128xf32>, i32 -> vector<8x128xf32>
    %c118_i32 = arith.constant 118 : i32
    %170 = tpu.dynamic_rotate %160 by %c118_i32 dim 1 : vector<8x128xf32>, i32 -> vector<8x128xf32>
    %c117_i32 = arith.constant 117 : i32
    %171 = tpu.dynamic_rotate %160 by %c117_i32 dim 1 : vector<8x128xf32>, i32 -> vector<8x128xf32>
    %c116_i32 = arith.constant 116 : i32
    %172 = tpu.dynamic_rotate %160 by %c116_i32 dim 1 : vector<8x128xf32>, i32 -> vector<8x128xf32>
    %c115_i32 = arith.constant 115 : i32
    %173 = tpu.dynamic_rotate %160 by %c115_i32 dim 1 : vector<8x128xf32>, i32 -> vector<8x128xf32>
    %c114_i32 = arith.constant 114 : i32
    %174 = tpu.dynamic_rotate %160 by %c114_i32 dim 1 : vector<8x128xf32>, i32 -> vector<8x128xf32>
    %c113_i32 = arith.constant 113 : i32
    %175 = tpu.dynamic_rotate %160 by %c113_i32 dim 1 : vector<8x128xf32>, i32 -> vector<8x128xf32>
    %176 = tpu.concatenate %160, %161, %162, %163, %164, %165, %166, %167, %168, %169, %170, %171, %172, %173, %174, %175 in 0 : vector<8x128xf32>, vector<8x128xf32>, vector<8x128xf32>, vector<8x128xf32>, vector<8x128xf32>, vector<8x128xf32>, vector<8x128xf32>, vector<8x128xf32>, vector<8x128xf32>, vector<8x128xf32>, vector<8x128xf32>, vector<8x128xf32>, vector<8x128xf32>, vector<8x128xf32>, vector<8x128xf32>, vector<8x128xf32> -> vector<128x128xf32>
    %c0_88 = arith.constant 0 : index
    %c0_89 = arith.constant 0 : index
    %177 = vector.load %arg13[%c0_88, %c0_89] : memref<8x128xf32, #tpu.memory_space<vmem>>, vector<8x128xf32>
    %cst_90 = arith.constant dense<0.000000e+00> : vector<8x128xf32>
    %178 = tpu.matmul %177, %176, %cst_90 {dimension_numbers = #tpu.dot_dimension_numbers<[1], [0], [0], [1], [0, 0, 1, 1], [], []>} : vector<8x128xf32>, vector<128x128xf32>, vector<8x128xf32> -> vector<8x128xf32>
    %c0_91 = arith.constant 0 : index
    %c0_92 = arith.constant 0 : index
    %179 = vector.load %arg14[%c0_91, %c0_92] : memref<8x1xf32, #tpu.memory_space<vmem>>, vector<8x1xf32>
    %180 = vector.broadcast %179 : vector<8x1xf32> to vector<8x128xf32>
    %181 = arith.addf %178, %180 : vector<8x128xf32>
    %c0_93 = arith.constant 0 : index
    %c0_94 = arith.constant 0 : index
    %182 = vector.load %arg15[%c0_93, %c0_94] : memref<8x128xf32, #tpu.memory_space<vmem>>, vector<8x128xf32>
    tpu.vector_store %arg15[%c0_93, %c0_94], %181 {strides = array<i32>} : memref<8x128xf32, #tpu.memory_space<vmem>>, vector<8x128xf32>,
    return
  }
}

</mosaic_0001>

<llo_original>
// kernel: learner_forward.1
$region0: #{learner_forward.1}
  #allocation0 [shape = 'u32[]', space=smem, size = 0x4, offset = 0x4, fixed_abs, tag = 'smem constant byte address 0x4 - core index']
  #allocation1 [shape = 'u32[144,128]{1,0:T(1,128)}', space=vmem, size = 0x12000, scoped, tag = 'internal scratch']
  %s0 = inlined_call_operand.vmem [shape: f32[8,512], index: 0, kind: input, shape index: {}]
  %s1 = inlined_call_operand.vmem [shape: f32[9,1,512], index: 1, kind: input, shape index: {}]
  %s2 = inlined_call_operand.vmem [shape: f32[8,72], index: 2, kind: input, shape index: {}]
  %s3 = inlined_call_operand.vmem [shape: f32[8,1], index: 3, kind: input, shape index: {}]
  %s4 = inlined_call_operand.vmem [shape: f32[8,1], index: 4, kind: input, shape index: {}]
  %s5 = inlined_call_operand.vmem [shape: f32[8,1], index: 5, kind: input, shape index: {}]
  %s6 = inlined_call_operand.vmem [shape: bf16[512,128], index: 6, kind: input, shape index: {}]
  %s7 = inlined_call_operand.vmem [shape: f32[9,1,128], index: 7, kind: input, shape index: {}]
  %s8 = inlined_call_operand.vmem [shape: f32[8,72], index: 8, kind: input, shape index: {}]
  %s9 = inlined_call_operand.vmem [shape: f32[8,1], index: 9, kind: input, shape index: {}]
  %s10 = inlined_call_operand.vmem [shape: f32[8,1], index: 10, kind: input, shape index: {}]
  %s11 = inlined_call_operand.vmem [shape: f32[8,1], index: 11, kind: input, shape index: {}]
  %s12 = inlined_call_operand.vmem [shape: bf16[128,128], index: 12, kind: input, shape index: {}]
  %s13 = inlined_call_operand.vmem [shape: f32[8,128], index: 13, kind: input, shape index: {}]
  %s14 = inlined_call_operand.vmem [shape: f32[8,1], index: 14, kind: input, shape index: {}]
  %s15 = inlined_call_operand.vmem [shape: f32[8,128], index: 15, kind: output, shape index: {}]
  %s16 = sld [smem:[#allocation0]]
  $region70: #{learner_forward.1} parent=0
    _
  %s18 = ssub.s32 1, %s16
  %s19 = scalar_select 0, %s18, %s16
  // Predicated region
  $region2: #{learner_forward.1} parent=0 // pred_check
    _
  $region3: #{learner_forward.1} parent=0 // pred_check_branch
    %21 = sbr.rel (0) target = $region5
  $region4: #{learner_forward.1} parent=0 // pred_region
    _
  $region5: #{learner_forward.1} parent=0 // pred_fallthru
    _
  // Predicated region
  $region6: #{learner_forward.1} parent=0 // pred_check
    _
  $region7: #{learner_forward.1} parent=0 // pred_check_branch
    %23 = sbr.rel (0) target = $region9
  $region8: #{learner_forward.1} parent=0 // pred_region
    _
  $region9: #{learner_forward.1} parent=0 // pred_fallthru
    _
  // Predicated region
  $region10: #{learner_forward.1} parent=0 // pred_check
    _
  $region11: #{learner_forward.1} parent=0 // pred_check_branch
    %25 = sbr.rel (0) target = $region13
  $region12: #{learner_forward.1} parent=0 // pred_region
    _
  $region13: #{learner_forward.1} parent=0 // pred_fallthru
    _
  // Predicated region
  $region14: #{learner_forward.1} parent=0 // pred_check
    _
  $region15: #{learner_forward.1} parent=0 // pred_check_branch
    %27 = sbr.rel (0) target = $region17
  $region16: #{learner_forward.1} parent=0 // pred_region
    _
  $region17: #{learner_forward.1} parent=0 // pred_fallthru
    _
  // Predicated region
  $region18: #{learner_forward.1} parent=0 // pred_check
    _
  $region19: #{learner_forward.1} parent=0 // pred_check_branch
    %29 = sbr.rel (0) target = $region21
  $region20: #{learner_forward.1} parent=0 // pred_region
    _
  $region21: #{learner_forward.1} parent=0 // pred_fallthru
    _
  // Predicated region
  $region22: #{learner_forward.1} parent=0 // pred_check
    _
  $region23: #{learner_forward.1} parent=0 // pred_check_branch
    %31 = sbr.rel (0) target = $region25
  $region24: #{learner_forward.1} parent=0 // pred_region
    _
  $region25: #{learner_forward.1} parent=0 // pred_fallthru
    _
  // Predicated region
  $region26: #{learner_forward.1} parent=0 // pred_check
    _
  $region27: #{learner_forward.1} parent=0 // pred_check_branch
    %33 = sbr.rel (0) target = $region29
  $region28: #{learner_forward.1} parent=0 // pred_region
    _
  $region29: #{learner_forward.1} parent=0 // pred_fallthru
    _
  // Predicated region
  $region30: #{learner_forward.1} parent=0 // pred_check
    _
  $region31: #{learner_forward.1} parent=0 // pred_check_branch
    %35 = sbr.rel (0) target = $region33
  $region32: #{learner_forward.1} parent=0 // pred_region
    _
  $region33: #{learner_forward.1} parent=0 // pred_fallthru
    _
  // Predicated region
  $region34: #{learner_forward.1} parent=0 // pred_check
    _
  $region35: #{learner_forward.1} parent=0 // pred_check_branch
    %37 = sbr.rel (0) target = $region37
  $region36: #{learner_forward.1} parent=0 // pred_region
    _
  $region37: #{learner_forward.1} parent=0 // pred_fallthru
    _
  // Predicated region
  $region38: #{learner_forward.1} parent=0 // pred_check
    _
  $region39: #{learner_forward.1} parent=0 // pred_check_branch
    %39 = sbr.rel (0) target = $region41
  $region40: #{learner_forward.1} parent=0 // pred_region
    _
  $region41: #{learner_forward.1} parent=0 // pred_fallthru
    _
  // Predicated region
  $region42: #{learner_forward.1} parent=0 // pred_check
    _
  $region43: #{learner_forward.1} parent=0 // pred_check_branch
    %41 = sbr.rel (0) target = $region45
  $region44: #{learner_forward.1} parent=0 // pred_region
    _
  $region45: #{learner_forward.1} parent=0 // pred_fallthru
    _
  // Predicated region
  $region46: #{learner_forward.1} parent=0 // pred_check
    _
  $region47: #{learner_forward.1} parent=0 // pred_check_branch
    %43 = sbr.rel (0) target = $region49
  $region48: #{learner_forward.1} parent=0 // pred_region
    _
  $region49: #{learner_forward.1} parent=0 // pred_fallthru
    _
  // Predicated region
  $region50: #{learner_forward.1} parent=0 // pred_check
    _
  $region51: #{learner_forward.1} parent=0 // pred_check_branch
    %45 = sbr.rel (0) target = $region53
  $region52: #{learner_forward.1} parent=0 // pred_region
    _
  $region53: #{learner_forward.1} parent=0 // pred_fallthru
    _
  // Predicated region
  $region54: #{learner_forward.1} parent=0 // pred_check
    _
  $region55: #{learner_forward.1} parent=0 // pred_check_branch
    %47 = sbr.rel (0) target = $region57
  $region56: #{learner_forward.1} parent=0 // pred_region
    _
  $region57: #{learner_forward.1} parent=0 // pred_fallthru
    _
  // Predicated region
  $region58: #{learner_forward.1} parent=0 // pred_check
    _
  $region59: #{learner_forward.1} parent=0 // pred_check_branch
    %49 = sbr.rel (0) target = $region61
  $region60: #{learner_forward.1} parent=0 // pred_region
    _
  $region61: #{learner_forward.1} parent=0 // pred_fallthru
    _
  %v51 = vld [vmem:[%s0] sm:$0xff]
  %v52 = vld [vmem:[%s0 + $0x8] sm:$0xff]
  %v53 = vld [vmem:[%s0 + $0x10] sm:$0xff]
  %v54 = vld [vmem:[%s0 + $0x18] sm:$0xff]
  %55 = vrot.lane.b32.xlu0 %v51, 17
  %v56 = vpop.permute.xlu0 %55
  %57 = vrot.lane.b32.xlu0 %v52, 17
  %v58 = vpop.permute.xlu0 %57
  %59 = vrot.lane.b32.xlu0 %v53, 17
  %v60 = vpop.permute.xlu0 %59
  %61 = vrot.lane.b32.xlu0 %v54, 17
  %v62 = vpop.permute.xlu0 %61
  %v63 = vlaneseq
  %v64 = vand.u32 %v63, 127
  %vm65 = vcmp.lt.s32.totalorder %v64, 17
  %v66 = vsel %vm65, %v60, %v62
  %v67 = vsel %vm65, %v58, %v60
  %v68 = vsel %vm65, %v56, %v58
  %v69 = vsel %vm65, %v62, %v56
  %v70 = vld [vmem:[%s1] sm:$0xf]
  %v72 = vlaneseq
  %v73 = vshrl.u32 %v72, 7
  %v74 = vsub.s32 0, %v73
  %v75 = vrot.slane %v70, %v74
  %v76 = vlaneseq
  %v77 = vshrl.u32 %v76, 7
  %v78 = vsub.s32 1, %v77
  %v79 = vrot.slane %v70, %v78
  %v80 = vlaneseq
  %v81 = vshrl.u32 %v80, 7
  %v82 = vsub.s32 2, %v81
  %v83 = vrot.slane %v70, %v82
  %v84 = vlaneseq
  %v85 = vshrl.u32 %v84, 7
  %v86 = vsub.s32 3, %v85
  %v87 = vrot.slane %v70, %v86
  %v92 = vmul.f32 %v69, %v75
  %v93 = vmul.f32 %v68, %v79
  %v94 = vmul.f32 %v67, %v83
  %v95 = vmul.f32 %v66, %v87
  %96 = vrot.lane.b32.xlu0 %v51, 16
  %v97 = vpop.permute.xlu0 %96
  %98 = vrot.lane.b32.xlu0 %v52, 16
  %v99 = vpop.permute.xlu0 %98
  %100 = vrot.lane.b32.xlu0 %v53, 16
  %v101 = vpop.permute.xlu0 %100
  %102 = vrot.lane.b32.xlu0 %v54, 16
  %v103 = vpop.permute.xlu0 %102
  %vm104 = vcmp.lt.s32.totalorder %v64, 16
  %v105 = vsel %vm104, %v101, %v103
  %v106 = vsel %vm104, %v99, %v101
  %v107 = vsel %vm104, %v97, %v99
  %v108 = vsel %vm104, %v103, %v97
  %s109 = scalar_lea.vmem %s1, 4
  %v110 = vld [vmem:[%s109] sm:$0xf]
  %v112 = vlaneseq
  %v113 = vshrl.u32 %v112, 7
  %v114 = vsub.s32 0, %v113
  %v115 = vrot.slane %v110, %v114
  %v116 = vlaneseq
  %v117 = vshrl.u32 %v116, 7
  %v118 = vsub.s32 1, %v117
  %v119 = vrot.slane %v110, %v118
  %v120 = vlaneseq
  %v121 = vshrl.u32 %v120, 7
  %v122 = vsub.s32 2, %v121
  %v123 = vrot.slane %v110, %v122
  %v124 = vlaneseq
  %v125 = vshrl.u32 %v124, 7
  %v126 = vsub.s32 3, %v125
  %v127 = vrot.slane %v110, %v126
  %v132 = vmul.f32 %v108, %v115
  %v133 = vmul.f32 %v107, %v119
  %v134 = vmul.f32 %v106, %v123
  %v135 = vmul.f32 %v105, %v127
  %136 = vrot.lane.b32.xlu0 %v51, 15
  %v137 = vpop.permute.xlu0 %136
  %138 = vrot.lane.b32.xlu0 %v52, 15
  %v139 = vpop.permute.xlu0 %138
  %140 = vrot.lane.b32.xlu0 %v53, 15
  %v141 = vpop.permute.xlu0 %140
  %142 = vrot.lane.b32.xlu0 %v54, 15
  %v143 = vpop.permute.xlu0 %142
  %vm144 = vcmp.lt.s32.totalorder %v64, 15
  %v145 = vsel %vm144, %v141, %v143
  %v146 = vsel %vm144, %v139, %v141
  %v147 = vsel %vm144, %v137, %v139
  %v148 = vsel %vm144, %v143, %v137
  %s149 = scalar_lea.vmem %s1, 8
  %v150 = vld [vmem:[%s149] sm:$0xf]
  %v152 = vlaneseq
  %v153 = vshrl.u32 %v152, 7
  %v154 = vsub.s32 0, %v153
  %v155 = vrot.slane %v150, %v154
  %v156 = vlaneseq
  %v157 = vshrl.u32 %v156, 7
  %v158 = vsub.s32 1, %v157
  %v159 = vrot.slane %v150, %v158
  %v160 = vlaneseq
  %v161 = vshrl.u32 %v160, 7
  %v162 = vsub.s32 2, %v161
  %v163 = vrot.slane %v150, %v162
  %v164 = vlaneseq
  %v165 = vshrl.u32 %v164, 7
  %v166 = vsub.s32 3, %v165
  %v167 = vrot.slane %v150, %v166
  %v172 = vmul.f32 %v148, %v155
  %v173 = vmul.f32 %v147, %v159
  %v174 = vmul.f32 %v146, %v163
  %v175 = vmul.f32 %v145, %v167
  %176 = vrot.lane.b32.xlu0 %v51, 1
  %v177 = vpop.permute.xlu0 %176
  %178 = vrot.lane.b32.xlu0 %v52, 1
  %v179 = vpop.permute.xlu0 %178
  %180 = vrot.lane.b32.xlu0 %v53, 1
  %v181 = vpop.permute.xlu0 %180
  %182 = vrot.lane.b32.xlu0 %v54, 1
  %v183 = vpop.permute.xlu0 %182
  %vm184 = vcmp.lt.s32.totalorder %v64, 1
  %v185 = vsel %vm184, %v181, %v183
  %v186 = vsel %vm184, %v179, %v181
  %v187 = vsel %vm184, %v177, %v179
  %v188 = vsel %vm184, %v183, %v177
  %s189 = scalar_lea.vmem %s1, 12
  %v190 = vld [vmem:[%s189] sm:$0xf]
  %v192 = vlaneseq
  %v193 = vshrl.u32 %v192, 7
  %v194 = vsub.s32 0, %v193
  %v195 = vrot.slane %v190, %v194
  %v196 = vlaneseq
  %v197 = vshrl.u32 %v196, 7
  %v198 = vsub.s32 1, %v197
  %v199 = vrot.slane %v190, %v198
  %v200 = vlaneseq
  %v201 = vshrl.u32 %v200, 7
  %v202 = vsub.s32 2, %v201
  %v203 = vrot.slane %v190, %v202
  %v204 = vlaneseq
  %v205 = vshrl.u32 %v204, 7
  %v206 = vsub.s32 3, %v205
  %v207 = vrot.slane %v190, %v206
  %v212 = vmul.f32 %v188, %v195
  %v213 = vmul.f32 %v187, %v199
  %v214 = vmul.f32 %v186, %v203
  %v215 = vmul.f32 %v185, %v207
  %216 = vrot.lane.b32.xlu0 %v51, 127
  %v217 = vpop.permute.xlu0 %216
  %218 = vrot.lane.b32.xlu0 %v52, 127
  %v219 = vpop.permute.xlu0 %218
  %220 = vrot.lane.b32.xlu0 %v53, 127
  %v221 = vpop.permute.xlu0 %220
  %222 = vrot.lane.b32.xlu0 %v54, 127
  %v223 = vpop.permute.xlu0 %222
  %vm224 = vcmp.lt.s32.totalorder %v64, 127
  %v225 = vsel %vm224, %v221, %v223
  %v226 = vsel %vm224, %v219, %v221
  %v227 = vsel %vm224, %v217, %v219
  %v228 = vsel %vm224, %v223, %v217
  %s229 = scalar_lea.vmem %s1, 20
  %v230 = vld [vmem:[%s229] sm:$0xf]
  %v232 = vlaneseq
  %v233 = vshrl.u32 %v232, 7
  %v234 = vsub.s32 0, %v233
  %v235 = vrot.slane %v230, %v234
  %v236 = vlaneseq
  %v237 = vshrl.u32 %v236, 7
  %v238 = vsub.s32 1, %v237
  %v239 = vrot.slane %v230, %v238
  %v240 = vlaneseq
  %v241 = vshrl.u32 %v240, 7
  %v242 = vsub.s32 2, %v241
  %v243 = vrot.slane %v230, %v242
  %v244 = vlaneseq
  %v245 = vshrl.u32 %v244, 7
  %v246 = vsub.s32 3, %v245
  %v247 = vrot.slane %v230, %v246
  %v252 = vmul.f32 %v227, %v235
  %v253 = vmul.f32 %v226, %v239
  %v254 = vmul.f32 %v225, %v243
  %v255 = vmul.f32 %v228, %v247
  %256 = vrot.lane.b32.xlu0 %v51, 113
  %v257 = vpop.permute.xlu0 %256
  %258 = vrot.lane.b32.xlu0 %v52, 113
  %v259 = vpop.permute.xlu0 %258
  %260 = vrot.lane.b32.xlu0 %v53, 113
  %v261 = vpop.permute.xlu0 %260
  %262 = vrot.lane.b32.xlu0 %v54, 113
  %v263 = vpop.permute.xlu0 %262
  %vm264 = vcmp.lt.s32.totalorder %v64, 113
  %v265 = vsel %vm264, %v261, %v263
  %v266 = vsel %vm264, %v259, %v261
  %v267 = vsel %vm264, %v257, %v259
  %v268 = vsel %vm264, %v263, %v257
  %s269 = scalar_lea.vmem %s1, 24
  %v270 = vld [vmem:[%s269] sm:$0xf]
  %v272 = vlaneseq
  %v273 = vshrl.u32 %v272, 7
  %v274 = vsub.s32 0, %v273
  %v275 = vrot.slane %v270, %v274
  %v276 = vlaneseq
  %v277 = vshrl.u32 %v276, 7
  %v278 = vsub.s32 1, %v277
  %v279 = vrot.slane %v270, %v278
  %v280 = vlaneseq
  %v281 = vshrl.u32 %v280, 7
  %v282 = vsub.s32 2, %v281
  %v283 = vrot.slane %v270, %v282
  %v284 = vlaneseq
  %v285 = vshrl.u32 %v284, 7
  %v286 = vsub.s32 3, %v285
  %v287 = vrot.slane %v270, %v286
  %v292 = vmul.f32 %v267, %v275
  %v293 = vmul.f32 %v266, %v279
  %v294 = vmul.f32 %v265, %v283
  %v295 = vmul.f32 %v268, %v287
  %296 = vrot.lane.b32.xlu0 %v51, 112
  %v297 = vpop.permute.xlu0 %296
  %298 = vrot.lane.b32.xlu0 %v52, 112
  %v299 = vpop.permute.xlu0 %298
  %300 = vrot.lane.b32.xlu0 %v53, 112
  %v301 = vpop.permute.xlu0 %300
  %302 = vrot.lane.b32.xlu0 %v54, 112
  %v303 = vpop.permute.xlu0 %302
  %vm304 = vcmp.lt.s32.totalorder %v64, 112
  %v305 = vsel %vm304, %v301, %v303
  %v306 = vsel %vm304, %v299, %v301
  %v307 = vsel %vm304, %v297, %v299
  %v308 = vsel %vm304, %v303, %v297
  %s309 = scalar_lea.vmem %s1, 28
  %v310 = vld [vmem:[%s309] sm:$0xf]
  %v312 = vlaneseq
  %v313 = vshrl.u32 %v312, 7
  %v314 = vsub.s32 0, %v313
  %v315 = vrot.slane %v310, %v314
  %v316 = vlaneseq
  %v317 = vshrl.u32 %v316, 7
  %v318 = vsub.s32 1, %v317
  %v319 = vrot.slane %v310, %v318
  %v320 = vlaneseq
  %v321 = vshrl.u32 %v320, 7
  %v322 = vsub.s32 2, %v321
  %v323 = vrot.slane %v310, %v322
  %v324 = vlaneseq
  %v325 = vshrl.u32 %v324, 7
  %v326 = vsub.s32 3, %v325
  %v327 = vrot.slane %v310, %v326
  %v332 = vmul.f32 %v307, %v315
  %v333 = vmul.f32 %v306, %v319
  %v334 = vmul.f32 %v305, %v323
  %v335 = vmul.f32 %v308, %v327
  %336 = vrot.lane.b32.xlu0 %v51, 111
  %v337 = vpop.permute.xlu0 %336
  %338 = vrot.lane.b32.xlu0 %v52, 111
  %v339 = vpop.permute.xlu0 %338
  %340 = vrot.lane.b32.xlu0 %v53, 111
  %v341 = vpop.permute.xlu0 %340
  %342 = vrot.lane.b32.xlu0 %v54, 111
  %v343 = vpop.permute.xlu0 %342
  %vm344 = vcmp.lt.s32.totalorder %v64, 111
  %v345 = vsel %vm344, %v341, %v343
  %v346 = vsel %vm344, %v339, %v341
  %v347 = vsel %vm344, %v337, %v339
  %v348 = vsel %vm344, %v343, %v337
  %s349 = scalar_lea.vmem %s1, 32
  %v350 = vld [vmem:[%s349] sm:$0xf]
  %v352 = vlaneseq
  %v353 = vshrl.u32 %v352, 7
  %v354 = vsub.s32 0, %v353
  %v355 = vrot.slane %v350, %v354
  %v356 = vlaneseq
  %v357 = vshrl.u32 %v356, 7
  %v358 = vsub.s32 1, %v357
  %v359 = vrot.slane %v350, %v358
  %v360 = vlaneseq
  %v361 = vshrl.u32 %v360, 7
  %v362 = vsub.s32 2, %v361
  %v363 = vrot.slane %v350, %v362
  %v364 = vlaneseq
  %v365 = vshrl.u32 %v364, 7
  %v366 = vsub.s32 3, %v365
  %v367 = vrot.slane %v350, %v366
  %v372 = vmul.f32 %v347, %v355
  %v373 = vmul.f32 %v346, %v359
  %v374 = vmul.f32 %v345, %v363
  %v375 = vmul.f32 %v348, %v367
  %v376 = vld [vmem:[%s2] sm:$0xff]
  %v377 = vld [vmem:[%s3] sm:$0xff]
  %379 = vset.pattern.permute.xlu0 0
  %380 = vperm.xlu0 %379, %v377
  %v381 = vpop.permute.xlu0 %380
  %vm383 = vcmask 588800
  %v385 = vsel %vm383, %v376, 0
  %387 = vmatprep.subr.mxu0 0.0
  %388 = vmatpush1.msra.mxu0 0.0
  %389 = vmatprep.subr.mxu0 0.0
  %390 = vmatpush1.msra.mxu0 0.0
  %391 = vmatprep.subr.mxu0 0.0
  %392 = vmatpush1.msra.mxu0 0.0
  %393 = vmatprep.subr.mxu0 0.0
  %394 = vmatpush1.msra.mxu0 0.0
  %395 = vmatprep.subr.mxu0 0.0
  %396 = vmatpush1.msra.mxu0 0.0
  %397 = vmatprep.subr.mxu0 0.0
  %398 = vmatpush1.msra.mxu0 0.0
  %399 = vmatprep.subr.mxu0 0.0
  %400 = vmatpush1.msra.mxu0 0.0
  %401 = vmatprep.subr.mxu0 %v373
  %402 = vmatpush1.msra.mxu0 %v372
  %403 = vmatprep.subr.mxu0 %v333
  %404 = vmatpush1.msra.mxu0 %v332
  %405 = vmatprep.subr.mxu0 %v293
  %406 = vmatpush1.msra.mxu0 %v292
  %407 = vmatprep.subr.mxu0 %v253
  %408 = vmatpush1.msra.mxu0 %v252
  %409 = vmatprep.subr.mxu0 %v52
  %410 = vmatpush1.msra.mxu0 %v51
  %411 = vmatprep.subr.mxu0 %v213
  %412 = vmatpush1.msra.mxu0 %v212
  %413 = vmatprep.subr.mxu0 %v173
  %414 = vmatpush1.msra.mxu0 %v172
  %415 = vmatprep.subr.mxu0 %v133
  %416 = vmatpush1.msra.mxu0 %v132
  %417 = vmatprep.subr.mxu0 %v93
  %418 = vmatpush1.msra.mxu0 %v92
  %419 = vmatprep.subr.mxu0 0.0
  %420 = vmatpush2.msra.mxu0 0.0
  %421 = vmatprep.subr.mxu0 0.0
  %422 = vmatpush2.msra.mxu0 0.0
  %423 = vmatprep.subr.mxu0 0.0
  %424 = vmatpush2.msra.mxu0 0.0
  %425 = vmatprep.subr.mxu0 0.0
  %426 = vmatpush2.msra.mxu0 0.0
  %427 = vmatprep.subr.mxu0 0.0
  %428 = vmatpush2.msra.mxu0 0.0
  %429 = vmatprep.subr.mxu0 0.0
  %430 = vmatpush2.msra.mxu0 0.0
  %431 = vmatprep.subr.mxu0 0.0
  %432 = vmatpush2.msra.mxu0 0.0
  %433 = vmatprep.subr.mxu0 0.0
  %434 = vmatpush2.msra.mxu0 0.0
  %435 = vmatprep.subr.mxu0 0.0
  %436 = vmatpush2.msra.mxu0 0.0
  %437 = vmatprep.subr.mxu0 0.0
  %438 = vmatpush2.msra.mxu0 0.0
  %439 = vmatprep.subr.mxu0 0.0
  %440 = vmatpush2.msra.mxu0 0.0
  %441 = vmatprep.subr.mxu0 0.0
  %442 = vmatpush2.msra.mxu0 0.0
  %443 = vmatprep.subr.mxu0 0.0
  %444 = vmatpush2.msra.mxu0 0.0
  %445 = vmatprep.subr.mxu0 0.0
  %446 = vmatpush2.msra.mxu0 0.0
  %447 = vmatprep.subr.mxu0 0.0
  %448 = vmatpush2.msra.mxu0 0.0
  %449 = vmatprep.subr.mxu0 0.0
  %450 = vmatpush2.msra.mxu0 0.0
  %451 = vmatprep.mubr.f32.mxu0 0.0
  %452 = vmatmul.mubr.f32.gmra.mxu0 %v385
  %v453 = vpop.f32.mrf.mxu0
  %v454 = vadd.f32 %v381, %v453
  %v455 = vpop.f32.mrf.mxu0
  %v456 = vadd.f32 %v381, %v455
  %457 = vdwg.mxu0
  %458 = vmatprep.subr.mxu0 0.0
  %459 = vmatpush1.msra.mxu0 0.0
  %460 = vmatprep.subr.mxu0 0.0
  %461 = vmatpush1.msra.mxu0 0.0
  %462 = vmatprep.subr.mxu0 0.0
  %463 = vmatpush1.msra.mxu0 0.0
  %464 = vmatprep.subr.mxu0 0.0
  %465 = vmatpush1.msra.mxu0 0.0
  %466 = vmatprep.subr.mxu0 0.0
  %467 = vmatpush1.msra.mxu0 0.0
  %468 = vmatprep.subr.mxu0 0.0
  %469 = vmatpush1.msra.mxu0 0.0
  %470 = vmatprep.subr.mxu0 0.0
  %471 = vmatpush1.msra.mxu0 0.0
  %472 = vmatprep.subr.mxu0 %v375
  %473 = vmatpush1.msra.mxu0 %v374
  %474 = vmatprep.subr.mxu0 %v335
  %475 = vmatpush1.msra.mxu0 %v334
  %476 = vmatprep.subr.mxu0 %v295
  %477 = vmatpush1.msra.mxu0 %v294
  %478 = vmatprep.subr.mxu0 %v255
  %479 = vmatpush1.msra.mxu0 %v254
  %480 = vmatprep.subr.mxu0 %v54
  %481 = vmatpush1.msra.mxu0 %v53
  %482 = vmatprep.subr.mxu0 %v215
  %483 = vmatpush1.msra.mxu0 %v214
  %484 = vmatprep.subr.mxu0 %v175
  %485 = vmatpush1.msra.mxu0 %v174
  %486 = vmatprep.subr.mxu0 %v135
  %487 = vmatpush1.msra.mxu0 %v134
  %488 = vmatprep.subr.mxu0 %v95
  %489 = vmatpush1.msra.mxu0 %v94
  %490 = vmatprep.subr.mxu0 0.0
  %491 = vmatpush2.msra.mxu0 0.0
  %492 = vmatprep.subr.mxu0 0.0
  %493 = vmatpush2.msra.mxu0 0.0
  %494 = vmatprep.subr.mxu0 0.0
  %495 = vmatpush2.msra.mxu0 0.0
  %496 = vmatprep.subr.mxu0 0.0
  %497 = vmatpush2.msra.mxu0 0.0
  %498 = vmatprep.subr.mxu0 0.0
  %499 = vmatpush2.msra.mxu0 0.0
  %500 = vmatprep.subr.mxu0 0.0
  %501 = vmatpush2.msra.mxu0 0.0
  %502 = vmatprep.subr.mxu0 0.0
  %503 = vmatpush2.msra.mxu0 0.0
  %504 = vmatprep.subr.mxu0 0.0
  %505 = vmatpush2.msra.mxu0 0.0
  %506 = vmatprep.subr.mxu0 0.0
  %507 = vmatpush2.msra.mxu0 0.0
  %508 = vmatprep.subr.mxu0 0.0
  %509 = vmatpush2.msra.mxu0 0.0
  %510 = vmatprep.subr.mxu0 0.0
  %511 = vmatpush2.msra.mxu0 0.0
  %512 = vmatprep.subr.mxu0 0.0
  %513 = vmatpush2.msra.mxu0 0.0
  %514 = vmatprep.subr.mxu0 0.0
  %515 = vmatpush2.msra.mxu0 0.0
  %516 = vmatprep.subr.mxu0 0.0
  %517 = vmatpush2.msra.mxu0 0.0
  %518 = vmatprep.subr.mxu0 0.0
  %519 = vmatpush2.msra.mxu0 0.0
  %520 = vmatprep.subr.mxu0 0.0
  %521 = vmatpush2.msra.mxu0 0.0
  %522 = vmatprep.mubr.f32.mxu0 0.0
  %523 = vmatmul.mubr.f32.gmra.mxu0 %v385
  %v524 = vpop.f32.mrf.mxu0
  %v525 = vadd.f32 %v381, %v524
  %v526 = vpop.f32.mrf.mxu0
  %v527 = vadd.f32 %v381, %v526
  %528 = vdwg.mxu0
  %v529 = vadd.f32 %v454, %v456
  %v530 = vadd.f32 %v529, %v525
  %v531 = vadd.f32 %v530, %v527
  %532 = vadd.xlane.f32.xlu0 %v531
  %v533 = vpop.xlane.xlu0 %532
  %v534 = vmul.f32 %v454, %v454
  %v535 = vmul.f32 %v456, %v456
  %v536 = vmul.f32 %v525, %v525
  %v537 = vmul.f32 %v527, %v527
  %v538 = vadd.f32 %v534, %v535
  %v539 = vadd.f32 %v538, %v536
  %v540 = vadd.f32 %v539, %v537
  %541 = vadd.xlane.f32.xlu0 %v540
  %v542 = vpop.xlane.xlu0 %541
  %v543 = vmul.f32 %v533, 0.001953125
  %v544 = vmul.f32 %v542, 0.001953125
  %v545 = vmul.f32 %v543, %v543
  %v546 = vsub.f32 %v544, %v545
  %v547 = vadd.f32 %v546, 1e-05
  %v548 = vrsqrt.pop %v547
  %v549 = vld [vmem:[%s4] sm:$0xff]
  %v550 = vmul.f32 %v548, %v549
  %v551 = vsub.f32 %v454, %v543
  %v552 = vsub.f32 %v456, %v543
  %v553 = vsub.f32 %v525, %v543
  %v554 = vsub.f32 %v527, %v543
  %556 = vset.pattern.permute.xlu0 0
  %557 = vperm.xlu0 %556, %v550
  %v558 = vpop.permute.xlu0 %557
  %v560 = vmul.f32 %v551, %v558
  %v561 = vmul.f32 %v552, %v558
  %v562 = vmul.f32 %v553, %v558
  %v563 = vmul.f32 %v554, %v558
  %v564 = vld [vmem:[%s5] sm:$0xff]
  %566 = vset.pattern.permute.xlu0 0
  %567 = vperm.xlu0 %566, %v564
  %v568 = vpop.permute.xlu0 %567
  %v570 = vadd.f32 %v560, %v568
  %v571 = vadd.f32 %v561, %v568
  %v572 = vadd.f32 %v562, %v568
  %v573 = vadd.f32 %v563, %v568
  %v574 = vmax.f32 %v570, 0.0
  %v575 = vmax.f32 %v571, 0.0
  %v576 = vmax.f32 %v572, 0.0
  %v577 = vmax.f32 %v573, 0.0
  %578 = vrot.lane.b32.xlu0 %v574, 127
  %v579 = vpop.permute.xlu0 %578
  %580 = vrot.lane.b32.xlu0 %v575, 127
  %v581 = vpop.permute.xlu0 %580
  %582 = vrot.lane.b32.xlu0 %v576, 127
  %v583 = vpop.permute.xlu0 %582
  %584 = vrot.lane.b32.xlu0 %v577, 127
  %v585 = vpop.permute.xlu0 %584
  %v586 = vsel %vm224, %v583, %v585
  %v587 = vsel %vm224, %v581, %v583
  %v588 = vsel %vm224, %v579, %v581
  %v589 = vsel %vm224, %v585, %v579
  %v590 = vmax.f32 %v574, %v588
  %v591 = vmax.f32 %v575, %v587
  %v592 = vmax.f32 %v576, %v586
  %v593 = vmax.f32 %v577, %v589
  %594 = vrot.lane.b32.xlu0 %v574, 112
  %v595 = vpop.permute.xlu0 %594
  %596 = vrot.lane.b32.xlu0 %v575, 112
  %v597 = vpop.permute.xlu0 %596
  %598 = vrot.lane.b32.xlu0 %v576, 112
  %v599 = vpop.permute.xlu0 %598
  %600 = vrot.lane.b32.xlu0 %v577, 112
  %v601 = vpop.permute.xlu0 %600
  %v602 = vsel %vm304, %v599, %v601
  %v603 = vsel %vm304, %v597, %v599
  %v604 = vsel %vm304, %v595, %v597
  %v605 = vsel %vm304, %v601, %v595
  %v606 = vmax.f32 %v590, %v604
  %v607 = vmax.f32 %v591, %v603
  %v608 = vmax.f32 %v592, %v602
  %v609 = vmax.f32 %v593, %v605
  %610 = vrot.lane.b32.xlu0 %v574, 111
  %v611 = vpop.permute.xlu0 %610
  %612 = vrot.lane.b32.xlu0 %v575, 111
  %v613 = vpop.permute.xlu0 %612
  %614 = vrot.lane.b32.xlu0 %v576, 111
  %v615 = vpop.permute.xlu0 %614
  %616 = vrot.lane.b32.xlu0 %v577, 111
  %v617 = vpop.permute.xlu0 %616
  %v618 = vsel %vm344, %v615, %v617
  %v619 = vsel %vm344, %v613, %v615
  %v620 = vsel %vm344, %v611, %v613
  %v621 = vsel %vm344, %v617, %v611
  %v622 = vmax.f32 %v606, %v620
  %v623 = vmax.f32 %v607, %v619
  %v624 = vmax.f32 %v608, %v618
  %v625 = vmax.f32 %v609, %v621
  %v626 = vld [vmem:[%s6] sm:$0xf]
  %v627 = vld [vmem:[%s6 + $0x4] sm:$0xf]
  %v628 = vld [vmem:[%s6 + $0x8] sm:$0xf]
  %v629 = vld [vmem:[%s6 + $0xc] sm:$0xf]
  %v630 = vld [vmem:[%s6 + $0x10] sm:$0xf]
  %v631 = vld [vmem:[%s6 + $0x14] sm:$0xf]
  %v632 = vld [vmem:[%s6 + $0x18] sm:$0xf]
  %v633 = vld [vmem:[%s6 + $0x1c] sm:$0xf]
  %v634 = vld [vmem:[%s6 + $0x20] sm:$0xf]
  %v635 = vld [vmem:[%s6 + $0x24] sm:$0xf]
  %v636 = vld [vmem:[%s6 + $0x28] sm:$0xf]
  %v637 = vld [vmem:[%s6 + $0x2c] sm:$0xf]
  %v638 = vld [vmem:[%s6 + $0x30] sm:$0xf]
  %v639 = vld [vmem:[%s6 + $0x34] sm:$0xf]
  %v640 = vld [vmem:[%s6 + $0x38] sm:$0xf]
  %v641 = vld [vmem:[%s6 + $0x3c] sm:$0xf]
  %v642 = vld [vmem:[%s6 + $0x40] sm:$0xf]
  %v643 = vld [vmem:[%s6 + $0x44] sm:$0xf]
  %v644 = vld [vmem:[%s6 + $0x48] sm:$0xf]
  %v645 = vld [vmem:[%s6 + $0x4c] sm:$0xf]
  %v646 = vld [vmem:[%s6 + $0x50] sm:$0xf]
  %v647 = vld [vmem:[%s6 + $0x54] sm:$0xf]
  %v648 = vld [vmem:[%s6 + $0x58] sm:$0xf]
  %v649 = vld [vmem:[%s6 + $0x5c] sm:$0xf]
  %v650 = vld [vmem:[%s6 + $0x60] sm:$0xf]
  %v651 = vld [vmem:[%s6 + $0x64] sm:$0xf]
  %v652 = vld [vmem:[%s6 + $0x68] sm:$0xf]
  %v653 = vld [vmem:[%s6 + $0x6c] sm:$0xf]
  %v654 = vld [vmem:[%s6 + $0x70] sm:$0xf]
  %v655 = vld [vmem:[%s6 + $0x74] sm:$0xf]
  %v656 = vld [vmem:[%s6 + $0x78] sm:$0xf]
  %v657 = vld [vmem:[%s6 + $0x7c] sm:$0xf]
  %v658 = vld [vmem:[%s6 + $0x80] sm:$0xf]
  %v659 = vld [vmem:[%s6 + $0x84] sm:$0xf]
  %v660 = vld [vmem:[%s6 + $0x88] sm:$0xf]
  %v661 = vld [vmem:[%s6 + $0x8c] sm:$0xf]
  %v662 = vld [vmem:[%s6 + $0x90] sm:$0xf]
  %v663 = vld [vmem:[%s6 + $0x94] sm:$0xf]
  %v664 = vld [vmem:[%s6 + $0x98] sm:$0xf]
  %v665 = vld [vmem:[%s6 + $0x9c] sm:$0xf]
  %v666 = vld [vmem:[%s6 + $0xa0] sm:$0xf]
  %v667 = vld [vmem:[%s6 + $0xa4] sm:$0xf]
  %v668 = vld [vmem:[%s6 + $0xa8] sm:$0xf]
  %v669 = vld [vmem:[%s6 + $0xac] sm:$0xf]
  %v670 = vld [vmem:[%s6 + $0xb0] sm:$0xf]
  %v671 = vld [vmem:[%s6 + $0xb4] sm:$0xf]
  %v672 = vld [vmem:[%s6 + $0xb8] sm:$0xf]
  %v673 = vld [vmem:[%s6 + $0xbc] sm:$0xf]
  %v674 = vld [vmem:[%s6 + $0xc0] sm:$0xf]
  %v675 = vld [vmem:[%s6 + $0xc4] sm:$0xf]
  %v676 = vld [vmem:[%s6 + $0xc8] sm:$0xf]
  %v677 = vld [vmem:[%s6 + $0xcc] sm:$0xf]
  %v678 = vld [vmem:[%s6 + $0xd0] sm:$0xf]
  %v679 = vld [vmem:[%s6 + $0xd4] sm:$0xf]
  %v680 = vld [vmem:[%s6 + $0xd8] sm:$0xf]
  %v681 = vld [vmem:[%s6 + $0xdc] sm:$0xf]
  %v682 = vld [vmem:[%s6 + $0xe0] sm:$0xf]
  %v683 = vld [vmem:[%s6 + $0xe4] sm:$0xf]
  %v684 = vld [vmem:[%s6 + $0xe8] sm:$0xf]
  %v685 = vld [vmem:[%s6 + $0xec] sm:$0xf]
  %v686 = vld [vmem:[%s6 + $0xf0] sm:$0xf]
  %v687 = vld [vmem:[%s6 + $0xf4] sm:$0xf]
  %v688 = vld [vmem:[%s6 + $0xf8] sm:$0xf]
  %v689 = vld [vmem:[%s6 + $0xfc] sm:$0xf]
  %v690 = vpack.c.bf16 %v622, %v622
  %v691 = vpack.c.bf16 %v623, %v623
  %v692 = vpack.c.bf16 %v624, %v624
  %v693 = vpack.c.bf16 %v625, %v625
  %v758 = vunpack.c.l.b16 %v626
  %v759 = vunpack.c.l.b16 %v627
  %v760 = vunpack.c.l.b16 %v628
  %v761 = vunpack.c.l.b16 %v629
  %v762 = vunpack.c.l.b16 %v630
  %v763 = vunpack.c.l.b16 %v631
  %v764 = vunpack.c.l.b16 %v632
  %v765 = vunpack.c.l.b16 %v633
  %v766 = vunpack.c.l.b16 %v634
  %v767 = vunpack.c.l.b16 %v635
  %v768 = vunpack.c.l.b16 %v636
  %v769 = vunpack.c.l.b16 %v637
  %v770 = vunpack.c.l.b16 %v638
  %v771 = vunpack.c.l.b16 %v639
  %v772 = vunpack.c.l.b16 %v640
  %v773 = vunpack.c.l.b16 %v641
  %v774 = vunpack.c.l.b16 %v642
  %v775 = vunpack.c.l.b16 %v643
  %v776 = vunpack.c.l.b16 %v644
  %v777 = vunpack.c.l.b16 %v645
  %v778 = vunpack.c.l.b16 %v646
  %v779 = vunpack.c.l.b16 %v647
  %v780 = vunpack.c.l.b16 %v648
  %v781 = vunpack.c.l.b16 %v649
  %v782 = vunpack.c.l.b16 %v650
  %v783 = vunpack.c.l.b16 %v651
  %v784 = vunpack.c.l.b16 %v652
  %v785 = vunpack.c.l.b16 %v653
  %v786 = vunpack.c.l.b16 %v654
  %v787 = vunpack.c.l.b16 %v655
  %v788 = vunpack.c.l.b16 %v656
  %v789 = vunpack.c.l.b16 %v657
  %v790 = vunpack.c.l.b16 %v658
  %v791 = vunpack.c.l.b16 %v659
  %v792 = vunpack.c.l.b16 %v660
  %v793 = vunpack.c.l.b16 %v661
  %v794 = vunpack.c.l.b16 %v662
  %v795 = vunpack.c.l.b16 %v663
  %v796 = vunpack.c.l.b16 %v664
  %v797 = vunpack.c.l.b16 %v665
  %v798 = vunpack.c.l.b16 %v666
  %v799 = vunpack.c.l.b16 %v667
  %v800 = vunpack.c.l.b16 %v668
  %v801 = vunpack.c.l.b16 %v669
  %v802 = vunpack.c.l.b16 %v670
  %v803 = vunpack.c.l.b16 %v671
  %v804 = vunpack.c.l.b16 %v672
  %v805 = vunpack.c.l.b16 %v673
  %v806 = vunpack.c.l.b16 %v674
  %v807 = vunpack.c.l.b16 %v675
  %v808 = vunpack.c.l.b16 %v676
  %v809 = vunpack.c.l.b16 %v677
  %v810 = vunpack.c.l.b16 %v678
  %v811 = vunpack.c.l.b16 %v679
  %v812 = vunpack.c.l.b16 %v680
  %v813 = vunpack.c.l.b16 %v681
  %v814 = vunpack.c.l.b16 %v682
  %v815 = vunpack.c.l.b16 %v683
  %v816 = vunpack.c.l.b16 %v684
  %v817 = vunpack.c.l.b16 %v685
  %v818 = vunpack.c.l.b16 %v686
  %v819 = vunpack.c.l.b16 %v687
  %v820 = vunpack.c.l.b16 %v688
  %v821 = vunpack.c.l.b16 %v689
  %v822 = vpack.c.b16 %v759, %v758
  %v823 = vpack.c.b16 %v761, %v760
  %v824 = vpack.c.b16 %v763, %v762
  %v825 = vpack.c.b16 %v765, %v764
  %v826 = vpack.c.b16 %v767, %v766
  %v827 = vpack.c.b16 %v769, %v768
  %v828 = vpack.c.b16 %v771, %v770
  %v829 = vpack.c.b16 %v773, %v772
  %v830 = vpack.c.b16 %v775, %v774
  %v831 = vpack.c.b16 %v777, %v776
  %v832 = vpack.c.b16 %v779, %v778
  %v833 = vpack.c.b16 %v781, %v780
  %v834 = vpack.c.b16 %v783, %v782
  %v835 = vpack.c.b16 %v785, %v784
  %v836 = vpack.c.b16 %v787, %v786
  %v837 = vpack.c.b16 %v789, %v788
  %v838 = vpack.c.b16 %v791, %v790
  %v839 = vpack.c.b16 %v793, %v792
  %v840 = vpack.c.b16 %v795, %v794
  %v841 = vpack.c.b16 %v797, %v796
  %v842 = vpack.c.b16 %v799, %v798
  %v843 = vpack.c.b16 %v801, %v800
  %v844 = vpack.c.b16 %v803, %v802
  %v845 = vpack.c.b16 %v805, %v804
  %v846 = vpack.c.b16 %v807, %v806
  %v847 = vpack.c.b16 %v809, %v808
  %v848 = vpack.c.b16 %v811, %v810
  %v849 = vpack.c.b16 %v813, %v812
  %v850 = vpack.c.b16 %v815, %v814
  %v851 = vpack.c.b16 %v817, %v816
  %v852 = vpack.c.b16 %v819, %v818
  %v853 = vpack.c.b16 %v821, %v820
  %886 = vmatprep.subr.bf16.mxu0 0
  %887 = vmatpush1.bf16.msra.mxu0 %v829
  %888 = vmatprep.subr.bf16.mxu0 0
  %889 = vmatpush1.bf16.msra.mxu0 %v828
  %890 = vmatprep.subr.bf16.mxu0 0
  %891 = vmatpush1.bf16.msra.mxu0 %v827
  %892 = vmatprep.subr.bf16.mxu0 0
  %893 = vmatpush1.bf16.msra.mxu0 %v826
  %894 = vmatprep.subr.bf16.mxu0 0
  %895 = vmatpush1.bf16.msra.mxu0 %v825
  %896 = vmatprep.subr.bf16.mxu0 0
  %897 = vmatpush1.bf16.msra.mxu0 %v824
  %898 = vmatprep.subr.bf16.mxu0 0
  %899 = vmatpush1.bf16.msra.mxu0 %v823
  %900 = vmatprep.subr.bf16.mxu0 0
  %901 = vmatpush1.bf16.msra.mxu0 %v822
  %902 = vmatprep.subr.bf16.mxu0 0
  %903 = vmatpush2.bf16.msra.mxu0 %v837
  %904 = vmatprep.subr.bf16.mxu0 0
  %905 = vmatpush2.bf16.msra.mxu0 %v836
  %906 = vmatprep.subr.bf16.mxu0 0
  %907 = vmatpush2.bf16.msra.mxu0 %v835
  %908 = vmatprep.subr.bf16.mxu0 0
  %909 = vmatpush2.bf16.msra.mxu0 %v834
  %910 = vmatprep.subr.bf16.mxu0 0
  %911 = vmatpush2.bf16.msra.mxu0 %v833
  %912 = vmatprep.subr.bf16.mxu0 0
  %913 = vmatpush2.bf16.msra.mxu0 %v832
  %914 = vmatprep.subr.bf16.mxu0 0
  %915 = vmatpush2.bf16.msra.mxu0 %v831
  %916 = vmatprep.subr.bf16.mxu0 0
  %917 = vmatpush2.bf16.msra.mxu0 %v830
  %918 = vmatprep.mubr.bf16.mxu0 %v691
  %919 = vmatmul.mubr.bf16.gmra.mxu0 %v690
  %v920 = vpop.f32.mrf.mxu0
  %v921 = vadd.f32 0.0, %v920
  %v922 = vpop.f32.mrf.mxu0
  %v923 = vpop.f32.mrf.mxu0
  %v924 = vpop.f32.mrf.mxu0
  %925 = vdwg.mxu0
  %926 = vmatprep.subr.bf16.mxu0 0
  %927 = vmatpush1.bf16.msra.mxu0 %v845
  %928 = vmatprep.subr.bf16.mxu0 0
  %929 = vmatpush1.bf16.msra.mxu0 %v844
  %930 = vmatprep.subr.bf16.mxu0 0
  %931 = vmatpush1.bf16.msra.mxu0 %v843
  %932 = vmatprep.subr.bf16.mxu0 0
  %933 = vmatpush1.bf16.msra.mxu0 %v842
  %934 = vmatprep.subr.bf16.mxu0 0
  %935 = vmatpush1.bf16.msra.mxu0 %v841
  %936 = vmatprep.subr.bf16.mxu0 0
  %937 = vmatpush1.bf16.msra.mxu0 %v840
  %938 = vmatprep.subr.bf16.mxu0 0
  %939 = vmatpush1.bf16.msra.mxu0 %v839
  %940 = vmatprep.subr.bf16.mxu0 0
  %941 = vmatpush1.bf16.msra.mxu0 %v838
  %942 = vmatprep.subr.bf16.mxu0 0
  %943 = vmatpush2.bf16.msra.mxu0 %v853
  %944 = vmatprep.subr.bf16.mxu0 0
  %945 = vmatpush2.bf16.msra.mxu0 %v852
  %946 = vmatprep.subr.bf16.mxu0 0
  %947 = vmatpush2.bf16.msra.mxu0 %v851
  %948 = vmatprep.subr.bf16.mxu0 0
  %949 = vmatpush2.bf16.msra.mxu0 %v850
  %950 = vmatprep.subr.bf16.mxu0 0
  %951 = vmatpush2.bf16.msra.mxu0 %v849
  %952 = vmatprep.subr.bf16.mxu0 0
  %953 = vmatpush2.bf16.msra.mxu0 %v848
  %954 = vmatprep.subr.bf16.mxu0 0
  %955 = vmatpush2.bf16.msra.mxu0 %v847
  %956 = vmatprep.subr.bf16.mxu0 0
  %957 = vmatpush2.bf16.msra.mxu0 %v846
  %958 = vmatprep.mubr.bf16.mxu0 %v693
  %959 = vmatmul.mubr.bf16.gmra.mxu0 %v692
  %v960 = vpop.f32.mrf.mxu0
  %v961 = vadd.f32 %v921, %v960
  %v962 = vpop.f32.mrf.mxu0
  %v963 = vpop.f32.mrf.mxu0
  %v964 = vpop.f32.mrf.mxu0
  %965 = vdwg.mxu0
  %966 = vrot.lane.b32.xlu0 %v961, 9
  %v967 = vpop.permute.xlu0 %966
  %v968 = vld [vmem:[%s7] sm:$0x1]
  %v970 = vlaneseq
  %v971 = vshrl.u32 %v970, 7
  %v972 = vsub.s32 0, %v971
  %v973 = vrot.slane %v968, %v972
  %v975 = vmul.f32 %v967, %v973
  %976 = vrot.lane.b32.xlu0 %v961, 8
  %v977 = vpop.permute.xlu0 %976
  %s978 = scalar_lea.vmem %s7, 1
  %v979 = vld [vmem:[%s978] sm:$0x1]
  %v981 = vlaneseq
  %v982 = vshrl.u32 %v981, 7
  %v983 = vsub.s32 0, %v982
  %v984 = vrot.slane %v979, %v983
  %v986 = vmul.f32 %v977, %v984
  %987 = vrot.lane.b32.xlu0 %v961, 7
  %v988 = vpop.permute.xlu0 %987
  %s989 = scalar_lea.vmem %s7, 2
  %v990 = vld [vmem:[%s989] sm:$0x1]
  %v992 = vlaneseq
  %v993 = vshrl.u32 %v992, 7
  %v994 = vsub.s32 0, %v993
  %v995 = vrot.slane %v990, %v994
  %v997 = vmul.f32 %v988, %v995
  %998 = vrot.lane.b32.xlu0 %v961, 1
  %v999 = vpop.permute.xlu0 %998
  %s1000 = scalar_lea.vmem %s7, 3
  %v1001 = vld [vmem:[%s1000] sm:$0x1]
  %v1003 = vlaneseq
  %v1004 = vshrl.u32 %v1003, 7
  %v1005 = vsub.s32 0, %v1004
  %v1006 = vrot.slane %v1001, %v1005
  %v1008 = vmul.f32 %v999, %v1006
  %1009 = vrot.lane.b32.xlu0 %v961, 127
  %v1010 = vpop.permute.xlu0 %1009
  %s1011 = scalar_lea.vmem %s7, 5
  %v1012 = vld [vmem:[%s1011] sm:$0x1]
  %v1014 = vlaneseq
  %v1015 = vshrl.u32 %v1014, 7
  %v1016 = vsub.s32 0, %v1015
  %v1017 = vrot.slane %v1012, %v1016
  %v1019 = vmul.f32 %v1010, %v1017
  %1020 = vrot.lane.b32.xlu0 %v961, 121
  %v1021 = vpop.permute.xlu0 %1020
  %s1022 = scalar_lea.vmem %s7, 6
  %v1023 = vld [vmem:[%s1022] sm:$0x1]
  %v1025 = vlaneseq
  %v1026 = vshrl.u32 %v1025, 7
  %v1027 = vsub.s32 0, %v1026
  %v1028 = vrot.slane %v1023, %v1027
  %v1030 = vmul.f32 %v1021, %v1028
  %1031 = vrot.lane.b32.xlu0 %v961, 120
  %v1032 = vpop.permute.xlu0 %1031
  %s1033 = scalar_lea.vmem %s7, 7
  %v1034 = vld [vmem:[%s1033] sm:$0x1]
  %v1036 = vlaneseq
  %v1037 = vshrl.u32 %v1036, 7
  %v1038 = vsub.s32 0, %v1037
  %v1039 = vrot.slane %v1034, %v1038
  %v1041 = vmul.f32 %v1032, %v1039
  %1042 = vrot.lane.b32.xlu0 %v961, 119
  %v1043 = vpop.permute.xlu0 %1042
  %s1044 = scalar_lea.vmem %s7, 8
  %v1045 = vld [vmem:[%s1044] sm:$0x1]
  %v1047 = vlaneseq
  %v1048 = vshrl.u32 %v1047, 7
  %v1049 = vsub.s32 0, %v1048
  %v1050 = vrot.slane %v1045, %v1049
  %v1052 = vmul.f32 %v1043, %v1050
  %v1053 = vld [vmem:[%s8] sm:$0xff]
  %v1054 = vld [vmem:[%s9] sm:$0xff]
  %1056 = vset.pattern.permute.xlu0 0
  %1057 = vperm.xlu0 %1056, %v1054
  %v1058 = vpop.permute.xlu0 %1057
  %v1061 = vsel %vm383, %v1053, 0
  %1063 = vmatprep.subr.mxu0 0.0
  %1064 = vmatpush1.msra.mxu0 0.0
  %1065 = vmatprep.subr.mxu0 0.0
  %1066 = vmatpush1.msra.mxu0 0.0
  %1067 = vmatprep.subr.mxu0 0.0
  %1068 = vmatpush1.msra.mxu0 0.0
  %1069 = vmatprep.subr.mxu0 0.0
  %1070 = vmatpush1.msra.mxu0 0.0
  %1071 = vmatprep.subr.mxu0 0.0
  %1072 = vmatpush1.msra.mxu0 0.0
  %1073 = vmatprep.subr.mxu0 0.0
  %1074 = vmatpush1.msra.mxu0 0.0
  %1075 = vmatprep.subr.mxu0 0.0
  %1076 = vmatpush1.msra.mxu0 0.0
  %1077 = vmatprep.subr.mxu0 0.0
  %1078 = vmatpush1.msra.mxu0 %v1052
  %1079 = vmatprep.subr.mxu0 0.0
  %1080 = vmatpush1.msra.mxu0 %v1041
  %1081 = vmatprep.subr.mxu0 0.0
  %1082 = vmatpush1.msra.mxu0 %v1030
  %1083 = vmatprep.subr.mxu0 0.0
  %1084 = vmatpush1.msra.mxu0 %v1019
  %1085 = vmatprep.subr.mxu0 0.0
  %1086 = vmatpush1.msra.mxu0 %v961
  %1087 = vmatprep.subr.mxu0 0.0
  %1088 = vmatpush1.msra.mxu0 %v1008
  %1089 = vmatprep.subr.mxu0 0.0
  %1090 = vmatpush1.msra.mxu0 %v997
  %1091 = vmatprep.subr.mxu0 0.0
  %1092 = vmatpush1.msra.mxu0 %v986
  %1093 = vmatprep.subr.mxu0 0.0
  %1094 = vmatpush1.msra.mxu0 %v975
  %1095 = vmatprep.subr.mxu0 0.0
  %1096 = vmatpush2.msra.mxu0 0.0
  %1097 = vmatprep.subr.mxu0 0.0
  %1098 = vmatpush2.msra.mxu0 0.0
  %1099 = vmatprep.subr.mxu0 0.0
  %1100 = vmatpush2.msra.mxu0 0.0
  %1101 = vmatprep.subr.mxu0 0.0
  %1102 = vmatpush2.msra.mxu0 0.0
  %1103 = vmatprep.subr.mxu0 0.0
  %1104 = vmatpush2.msra.mxu0 0.0
  %1105 = vmatprep.subr.mxu0 0.0
  %1106 = vmatpush2.msra.mxu0 0.0
  %1107 = vmatprep.subr.mxu0 0.0
  %1108 = vmatpush2.msra.mxu0 0.0
  %1109 = vmatprep.subr.mxu0 0.0
  %1110 = vmatpush2.msra.mxu0 0.0
  %1111 = vmatprep.subr.mxu0 0.0
  %1112 = vmatpush2.msra.mxu0 0.0
  %1113 = vmatprep.subr.mxu0 0.0
  %1114 = vmatpush2.msra.mxu0 0.0
  %1115 = vmatprep.subr.mxu0 0.0
  %1116 = vmatpush2.msra.mxu0 0.0
  %1117 = vmatprep.subr.mxu0 0.0
  %1118 = vmatpush2.msra.mxu0 0.0
  %1119 = vmatprep.subr.mxu0 0.0
  %1120 = vmatpush2.msra.mxu0 0.0
  %1121 = vmatprep.subr.mxu0 0.0
  %1122 = vmatpush2.msra.mxu0 0.0
  %1123 = vmatprep.subr.mxu0 0.0
  %1124 = vmatpush2.msra.mxu0 0.0
  %1125 = vmatprep.subr.mxu0 0.0
  %1126 = vmatpush2.msra.mxu0 0.0
  %1127 = vmatprep.mubr.f32.mxu0 0.0
  %1128 = vmatmul.mubr.f32.gmra.mxu0 %v1061
  %v1129 = vpop.f32.mrf.mxu0
  %v1130 = vadd.f32 %v1058, %v1129
  %v1131 = vpop.f32.mrf.mxu0
  %1132 = vdwg.mxu0
  %1133 = vadd.xlane.f32.xlu0 %v1130
  %v1134 = vpop.xlane.xlu0 %1133
  %v1135 = vmul.f32 %v1130, %v1130
  %1136 = vadd.xlane.f32.xlu0 %v1135
  %v1137 = vpop.xlane.xlu0 %1136
  %v1138 = vmul.f32 %v1134, 0.0078125
  %v1139 = vmul.f32 %v1137, 0.0078125
  %v1140 = vmul.f32 %v1138, %v1138
  %v1141 = vsub.f32 %v1139, %v1140
  %v1142 = vadd.f32 %v1141, 1e-05
  %v1143 = vrsqrt.pop %v1142
  %v1144 = vld [vmem:[%s10] sm:$0xff]
  %v1145 = vmul.f32 %v1143, %v1144
  %v1146 = vsub.f32 %v1130, %v1138
  %1148 = vset.pattern.permute.xlu0 0
  %1149 = vperm.xlu0 %1148, %v1145
  %v1150 = vpop.permute.xlu0 %1149
  %v1152 = vmul.f32 %v1146, %v1150
  %v1153 = vld [vmem:[%s11] sm:$0xff]
  %1155 = vset.pattern.permute.xlu0 0
  %1156 = vperm.xlu0 %1155, %v1153
  %v1157 = vpop.permute.xlu0 %1156
  %v1159 = vadd.f32 %v1152, %v1157
  %v1160 = vmax.f32 %v1159, 0.0
  %1161 = vrot.lane.b32.xlu0 %v1160, 127
  %v1162 = vpop.permute.xlu0 %1161
  %v1163 = vmax.f32 %v1160, %v1162
  %1164 = vrot.lane.b32.xlu0 %v1160, 120
  %v1165 = vpop.permute.xlu0 %1164
  %v1166 = vmax.f32 %v1163, %v1165
  %1167 = vrot.lane.b32.xlu0 %v1160, 119
  %v1168 = vpop.permute.xlu0 %1167
  %v1169 = vmax.f32 %v1166, %v1168
  %v1170 = vld [vmem:[%s12] sm:$0xf]
  %v1171 = vld [vmem:[%s12 + $0x4] sm:$0xf]
  %v1172 = vld [vmem:[%s12 + $0x8] sm:$0xf]
  %v1173 = vld [vmem:[%s12 + $0xc] sm:$0xf]
  %v1174 = vld [vmem:[%s12 + $0x10] sm:$0xf]
  %v1175 = vld [vmem:[%s12 + $0x14] sm:$0xf]
  %v1176 = vld [vmem:[%s12 + $0x18] sm:$0xf]
  %v1177 = vld [vmem:[%s12 + $0x1c] sm:$0xf]
  %v1178 = vld [vmem:[%s12 + $0x20] sm:$0xf]
  %v1179 = vld [vmem:[%s12 + $0x24] sm:$0xf]
  %v1180 = vld [vmem:[%s12 + $0x28] sm:$0xf]
  %v1181 = vld [vmem:[%s12 + $0x2c] sm:$0xf]
  %v1182 = vld [vmem:[%s12 + $0x30] sm:$0xf]
  %v1183 = vld [vmem:[%s12 + $0x34] sm:$0xf]
  %v1184 = vld [vmem:[%s12 + $0x38] sm:$0xf]
  %v1185 = vld [vmem:[%s12 + $0x3c] sm:$0xf]
  %v1186 = vpack.c.bf16 %v1169, %v1169
  %v1203 = vunpack.c.l.b16 %v1170
  %v1204 = vunpack.c.l.b16 %v1171
  %v1205 = vunpack.c.l.b16 %v1172
  %v1206 = vunpack.c.l.b16 %v1173
  %v1207 = vunpack.c.l.b16 %v1174
  %v1208 = vunpack.c.l.b16 %v1175
  %v1209 = vunpack.c.l.b16 %v1176
  %v1210 = vunpack.c.l.b16 %v1177
  %v1211 = vunpack.c.l.b16 %v1178
  %v1212 = vunpack.c.l.b16 %v1179
  %v1213 = vunpack.c.l.b16 %v1180
  %v1214 = vunpack.c.l.b16 %v1181
  %v1215 = vunpack.c.l.b16 %v1182
  %v1216 = vunpack.c.l.b16 %v1183
  %v1217 = vunpack.c.l.b16 %v1184
  %v1218 = vunpack.c.l.b16 %v1185
  %v1219 = vpack.c.b16 %v1204, %v1203
  %v1220 = vpack.c.b16 %v1206, %v1205
  %v1221 = vpack.c.b16 %v1208, %v1207
  %v1222 = vpack.c.b16 %v1210, %v1209
  %v1223 = vpack.c.b16 %v1212, %v1211
  %v1224 = vpack.c.b16 %v1214, %v1213
  %v1225 = vpack.c.b16 %v1216, %v1215
  %v1226 = vpack.c.b16 %v1218, %v1217
  %1235 = vmatprep.subr.bf16.mxu0 0
  %1236 = vmatpush1.bf16.msra.mxu0 %v1226
  %1237 = vmatprep.subr.bf16.mxu0 0
  %1238 = vmatpush1.bf16.msra.mxu0 %v1225
  %1239 = vmatprep.subr.bf16.mxu0 0
  %1240 = vmatpush1.bf16.msra.mxu0 %v1224
  %1241 = vmatprep.subr.bf16.mxu0 0
  %1242 = vmatpush1.bf16.msra.mxu0 %v1223
  %1243 = vmatprep.subr.bf16.mxu0 0
  %1244 = vmatpush1.bf16.msra.mxu0 %v1222
  %1245 = vmatprep.subr.bf16.mxu0 0
  %1246 = vmatpush1.bf16.msra.mxu0 %v1221
  %1247 = vmatprep.subr.bf16.mxu0 0
  %1248 = vmatpush1.bf16.msra.mxu0 %v1220
  %1249 = vmatprep.subr.bf16.mxu0 0
  %1250 = vmatpush1.bf16.msra.mxu0 %v1219
  %1251 = vmatprep.subr.bf16.mxu0 0
  %1252 = vmatpush2.bf16.msra.mxu0 0
  %1253 = vmatprep.subr.bf16.mxu0 0
  %1254 = vmatpush2.bf16.msra.mxu0 0
  %1255 = vmatprep.subr.bf16.mxu0 0
  %1256 = vmatpush2.bf16.msra.mxu0 0
  %1257 = vmatprep.subr.bf16.mxu0 0
  %1258 = vmatpush2.bf16.msra.mxu0 0
  %1259 = vmatprep.subr.bf16.mxu0 0
  %1260 = vmatpush2.bf16.msra.mxu0 0
  %1261 = vmatprep.subr.bf16.mxu0 0
  %1262 = vmatpush2.bf16.msra.mxu0 0
  %1263 = vmatprep.subr.bf16.mxu0 0
  %1264 = vmatpush2.bf16.msra.mxu0 0
  %1265 = vmatprep.subr.bf16.mxu0 0
  %1266 = vmatpush2.bf16.msra.mxu0 0
  %1267 = vmatprep.mubr.bf16.mxu0 0
  %1268 = vmatmul.mubr.bf16.gmra.mxu0 %v1186
  %v1269 = vpop.f32.mrf.mxu0
  %v1270 = vadd.f32 0.0, %v1269
  %v1271 = vpop.f32.mrf.mxu0
  %v1272 = vpop.f32.mrf.mxu0
  %v1273 = vpop.f32.mrf.mxu0
  %1274 = vdwg.mxu0
  %1275 = vrot.lane.b32.xlu0 %v1270, 127
  %v1276 = vpop.permute.xlu0 %1275
  %1277 = vrot.lane.b32.xlu0 %v1270, 126
  %v1278 = vpop.permute.xlu0 %1277
  %1279 = vrot.lane.b32.xlu0 %v1270, 125
  %v1280 = vpop.permute.xlu0 %1279
  %1281 = vrot.lane.b32.xlu0 %v1270, 124
  %v1282 = vpop.permute.xlu0 %1281
  %1283 = vrot.lane.b32.xlu0 %v1270, 123
  %v1284 = vpop.permute.xlu0 %1283
  %1285 = vrot.lane.b32.xlu0 %v1270, 122
  %v1286 = vpop.permute.xlu0 %1285
  %1287 = vrot.lane.b32.xlu0 %v1270, 121
  %v1288 = vpop.permute.xlu0 %1287
  %1289 = vrot.lane.b32.xlu0 %v1270, 120
  %v1290 = vpop.permute.xlu0 %1289
  %1291 = vrot.lane.b32.xlu0 %v1270, 119
  %v1292 = vpop.permute.xlu0 %1291
  %1293 = vrot.lane.b32.xlu0 %v1270, 118
  %v1294 = vpop.permute.xlu0 %1293
  %1295 = vrot.lane.b32.xlu0 %v1270, 117
  %v1296 = vpop.permute.xlu0 %1295
  %1297 = vrot.lane.b32.xlu0 %v1270, 116
  %v1298 = vpop.permute.xlu0 %1297
  %1299 = vrot.lane.b32.xlu0 %v1270, 115
  %v1300 = vpop.permute.xlu0 %1299
  %1301 = vrot.lane.b32.xlu0 %v1270, 114
  %v1302 = vpop.permute.xlu0 %1301
  %1303 = vrot.lane.b32.xlu0 %v1270, 113
  %v1304 = vpop.permute.xlu0 %1303
  %v1305 = vld [vmem:[%s13] sm:$0xff]
  %v1306 = vld [vmem:[%s14] sm:$0xff]
  %1308 = vset.pattern.permute.xlu0 0
  %1309 = vperm.xlu0 %1308, %v1306
  %v1310 = vpop.permute.xlu0 %1309
  %1312 = vmatprep.subr.mxu0 0.0
  %1313 = vmatpush1.msra.mxu0 %v1304
  %1314 = vmatprep.subr.mxu0 0.0
  %1315 = vmatpush1.msra.mxu0 %v1302
  %1316 = vmatprep.subr.mxu0 0.0
  %1317 = vmatpush1.msra.mxu0 %v1300
  %1318 = vmatprep.subr.mxu0 0.0
  %1319 = vmatpush1.msra.mxu0 %v1298
  %1320 = vmatprep.subr.mxu0 0.0
  %1321 = vmatpush1.msra.mxu0 %v1296
  %1322 = vmatprep.subr.mxu0 0.0
  %1323 = vmatpush1.msra.mxu0 %v1294
  %1324 = vmatprep.subr.mxu0 0.0
  %1325 = vmatpush1.msra.mxu0 %v1292
  %1326 = vmatprep.subr.mxu0 0.0
  %1327 = vmatpush1.msra.mxu0 %v1290
  %1328 = vmatprep.subr.mxu0 0.0
  %1329 = vmatpush1.msra.mxu0 %v1288
  %1330 = vmatprep.subr.mxu0 0.0
  %1331 = vmatpush1.msra.mxu0 %v1286
  %1332 = vmatprep.subr.mxu0 0.0
  %1333 = vmatpush1.msra.mxu0 %v1284
  %1334 = vmatprep.subr.mxu0 0.0
  %1335 = vmatpush1.msra.mxu0 %v1282
  %1336 = vmatprep.subr.mxu0 0.0
  %1337 = vmatpush1.msra.mxu0 %v1280
  %1338 = vmatprep.subr.mxu0 0.0
  %1339 = vmatpush1.msra.mxu0 %v1278
  %1340 = vmatprep.subr.mxu0 0.0
  %1341 = vmatpush1.msra.mxu0 %v1276
  %1342 = vmatprep.subr.mxu0 0.0
  %1343 = vmatpush1.msra.mxu0 %v1270
  %1344 = vmatprep.subr.mxu0 0.0
  %1345 = vmatpush2.msra.mxu0 0.0
  %1346 = vmatprep.subr.mxu0 0.0
  %1347 = vmatpush2.msra.mxu0 0.0
  %1348 = vmatprep.subr.mxu0 0.0
  %1349 = vmatpush2.msra.mxu0 0.0
  %1350 = vmatprep.subr.mxu0 0.0
  %1351 = vmatpush2.msra.mxu0 0.0
  %1352 = vmatprep.subr.mxu0 0.0
  %1353 = vmatpush2.msra.mxu0 0.0
  %1354 = vmatprep.subr.mxu0 0.0
  %1355 = vmatpush2.msra.mxu0 0.0
  %1356 = vmatprep.subr.mxu0 0.0
  %1357 = vmatpush2.msra.mxu0 0.0
  %1358 = vmatprep.subr.mxu0 0.0
  %1359 = vmatpush2.msra.mxu0 0.0
  %1360 = vmatprep.subr.mxu0 0.0
  %1361 = vmatpush2.msra.mxu0 0.0
  %1362 = vmatprep.subr.mxu0 0.0
  %1363 = vmatpush2.msra.mxu0 0.0
  %1364 = vmatprep.subr.mxu0 0.0
  %1365 = vmatpush2.msra.mxu0 0.0
  %1366 = vmatprep.subr.mxu0 0.0
  %1367 = vmatpush2.msra.mxu0 0.0
  %1368 = vmatprep.subr.mxu0 0.0
  %1369 = vmatpush2.msra.mxu0 0.0
  %1370 = vmatprep.subr.mxu0 0.0
  %1371 = vmatpush2.msra.mxu0 0.0
  %1372 = vmatprep.subr.mxu0 0.0
  %1373 = vmatpush2.msra.mxu0 0.0
  %1374 = vmatprep.subr.mxu0 0.0
  %1375 = vmatpush2.msra.mxu0 0.0
  %1376 = vmatprep.mubr.f32.mxu0 0.0
  %1377 = vmatmul.mubr.f32.gmra.mxu0 %v1305
  %v1378 = vpop.f32.mrf.mxu0
  %v1379 = vadd.f32 %v1310, %v1378
  %v1380 = vpop.f32.mrf.mxu0
  %1381 = vdwg.mxu0
  %1382 = vst [vmem:[%s15] sm:$0xff] %v1379
  // Predicated region
  $region62: #{learner_forward.1} parent=0 // pred_check
    _
  $region63: #{learner_forward.1} parent=0 // pred_check_branch
    %1384 = sbr.rel (0) target = $region65
  $region64: #{learner_forward.1} parent=0 // pred_region
    _
  $region65: #{learner_forward.1} parent=0 // pred_fallthru
    _
  // Predicated region
  $region66: #{learner_forward.1} parent=0 // pred_check
    _
  $region67: #{learner_forward.1} parent=0 // pred_check_branch
    %1386 = sbr.rel (0) target = $region69
  $region68: #{learner_forward.1} parent=0 // pred_region
    _
  $region69: #{learner_forward.1} parent=0 // pred_fallthru
    _

</llo_original>
